<compile_context>
chip_gen: v7x
topology: tpu7x:2x2x1
jax: 0.10.0
libtpu: 0.0.40
codegen_flags: <defaults>
</compile_context>

<pallas_src>
import jax
import jax.numpy as jnp
import numpy as np
from jax.experimental import pallas as pl
from jax.experimental.pallas import tpu as pltpu

# Small-but-consistent hyperparameters (module: Conv1d(k=2) -> ReLU -> permute ->
# multi-layer LSTM (batch_first) -> Dropout -> Linear -> last timestep).
IN_CHANNELS = 4
OUT_CHANNELS = 9
HIDDEN_SIZE = 32
NUM_LAYERS = 2
OUTPUT_SIZE = 1
BATCH = 2
LENGTH = 9          # Conv1d(kernel_size=2)  ->  seq_len T = LENGTH - 1 = 8


def net_kernel(x_ref, cw_ref, cb_ref, w_ref, b_ref, h0_ref, c0_ref,
               fcw_ref, fcb_ref, out_ref):
    """Fused Conv1d + ReLU + stacked LSTM + Linear (last timestep)."""
    num_layers, B, H = h0_ref.shape
    T = x_ref.shape[0] // B

    # ---- Conv1d(kernel_size=2) + ReLU as a single im2col matmul -------------
    # x_ref rows are t-major im2col rows [x[:, t, :], x[:, t+1, :]] (2*C_in wide).
    # cw / cb are zero-padded to H output columns, so the layer-0 LSTM input is
    # already H-wide (padded lanes stay exactly 0 after ReLU).
    conv = jnp.maximum(
        jnp.dot(x_ref[...], cw_ref[...], preferred_element_type=jnp.float32)
        + cb_ref[...], 0.0)                                   # (T*B, H)
    seq = [conv[t * B:(t + 1) * B, :] for t in range(T)]      # T x (B, H) in vregs

    # ---- stacked LSTM, one fused [x_t, h] @ (2H, 4H) matmul per step ---------
    # PyTorch gate order i, f, g, o; bias is pre-summed b_ih + b_hh.
    for l in range(num_layers):
        w_l = w_ref[l]                       # (2H, 4H) = [W_ih^T ; W_hh^T]
        b_l = b_ref[l]                       # (1, 4H)
        h = h0_ref[l]                        # (B, H)
        c = c0_ref[l]                        # (B, H)
        nxt = []
        for t in range(T):
            xh = jnp.concatenate([seq[t], h], axis=-1)        # (B, 2H)
            gates = (jnp.dot(xh, w_l, preferred_element_type=jnp.float32)
                     + b_l)                                   # (B, 4H), lane-dense
            sig = jax.nn.sigmoid(gates)      # whole-vreg EUP push
            th = jnp.tanh(gates)             # whole-vreg EUP push
            i_g = sig[:, 0 * H:1 * H]
            f_g = sig[:, 1 * H:2 * H]
            g_g = th[:, 2 * H:3 * H]
            o_g = sig[:, 3 * H:4 * H]
            c = f_g * c + i_g * g_g
            h = o_g * jnp.tanh(c)
            nxt.append(h)
        seq = nxt                            # next layer's input stays in vregs

    # ---- Dropout + Linear on the last timestep -------------------------------
    # TODO(synk): Dropout(0.2) is treated as eval-mode identity (no RNG mask).
    out_ref[...] = (jnp.dot(seq[-1], fcw_ref[...],
                            preferred_element_type=jnp.float32) + fcb_ref[...])


def pack_params(params):
    """Wrapper-side weight packing: pad / transpose / stack / pre-sum biases."""
    H = HIDDEN_SIZE
    # Conv1d taps -> (2*C_in, H), zero-padded columns [C_out:H]; bias -> (1, H).
    w0 = params['conv_w'][:, :, 0]                       # (C_out, C_in)
    w1 = params['conv_w'][:, :, 1]
    cw = jnp.concatenate([w0.T, w1.T], axis=0)           # (2*C_in, C_out)
    cw = jnp.pad(cw, ((0, 0), (0, H - OUT_CHANNELS)))    # (2*C_in, H)
    cb = jnp.pad(params['conv_b'][None, :],
                 ((0, 0), (0, H - OUT_CHANNELS)))        # (1, H)
    # LSTM layers -> stacked (L, 2H, 4H) weights and (L, 1, 4H) summed biases.
    w_list, b_list = [], []
    for l in range(NUM_LAYERS):
        wih = params['w_ih'][l]                                   # (4H, in_sz)
        wih = jnp.pad(wih, ((0, 0), (0, H - wih.shape[1])))       # (4H, H)
        w_list.append(jnp.concatenate([wih.T, params['w_hh'][l].T], axis=0))
        b_list.append((params['b_ih'][l] + params['b_hh'][l])[None, :])
    w_stack = jnp.stack(w_list)              # (L, 2H, 4H)
    b_stack = jnp.stack(b_list)              # (L, 1, 4H)
    fcw = params['fc_w'].T                   # (H, OUTPUT_SIZE)
    fcb = params['fc_b'][None, :]            # (1, OUTPUT_SIZE)
    return cw, cb, w_stack, b_stack, fcw, fcb


def net_forward(x_ncl, params, h0, c0):
    """x_ncl: (B, C_in, L) float32 (PyTorch NCL). Returns (B, OUTPUT_SIZE)."""
    B, C_in, L = x_ncl.shape
    T = L - 1
    cw, cb, w_stack, b_stack, fcw, fcb = pack_params(params)

    # Glue: NCL -> (B, L, C); im2col concat of the two conv taps on features;
    # flatten t-major so per-timestep (B, H) slices are contiguous sublane rows.
    x_blc = jnp.transpose(x_ncl, (0, 2, 1))                            # (B, L, C)
    x2 = jnp.concatenate([x_blc[:, :T, :], x_blc[:, 1:, :]], axis=-1)  # (B, T, 2C)
    x2 = jnp.transpose(x2, (1, 0, 2)).reshape(T * B, 2 * C_in)         # (T*B, 2C)

    vmem = pl.BlockSpec(memory_space=pltpu.MemorySpace.VMEM)
    return pl.pallas_call(
        net_kernel,
        out_shape=jax.ShapeDtypeStruct((B, OUTPUT_SIZE), jnp.float32),
        in_specs=[vmem] * 9,
        out_specs=vmem,
    )(x2, cw, cb, w_stack, b_stack, h0, c0, fcw, fcb)


def init_params(key):
    """Deterministic PyTorch-default-style uniform init (synthetic weights)."""
    H = HIDDEN_SIZE
    keys = jax.random.split(key, 4 + 4 * NUM_LAYERS)

    def u(k, shape, fan):
        bound = 1.0 / float(np.sqrt(fan))
        return jax.random.uniform(k, shape, jnp.float32, -bound, bound)

    conv_w = u(keys[0], (OUT_CHANNELS, IN_CHANNELS, 2), IN_CHANNELS * 2)
    conv_b = u(keys[1], (OUT_CHANNELS,), IN_CHANNELS * 2)
    fc_w = u(keys[2], (OUTPUT_SIZE, H), H)
    fc_b = u(keys[3], (OUTPUT_SIZE,), H)

    w_ih, w_hh, b_ih, b_hh = [], [], [], []
    for l in range(NUM_LAYERS):
        in_sz = OUT_CHANNELS if l == 0 else H
        base = 4 + 4 * l
        w_ih.append(u(keys[base + 0], (4 * H, in_sz), H))
        w_hh.append(u(keys[base + 1], (4 * H, H), H))
        b_ih.append(u(keys[base + 2], (4 * H,), H))
        b_hh.append(u(keys[base + 3], (4 * H,), H))
    return dict(conv_w=conv_w, conv_b=conv_b, w_ih=w_ih, w_hh=w_hh,
                b_ih=b_ih, b_hh=b_hh, fc_w=fc_w, fc_b=fc_b)


def net_reference(x_ncl, params, h0, c0):
    """Pure-JAX reference of the PyTorch forward (eval-mode dropout)."""
    B, _, L = x_ncl.shape
    T = L - 1
    H = HIDDEN_SIZE
    w0, w1 = params['conv_w'][:, :, 0], params['conv_w'][:, :, 1]
    y = (jnp.einsum('bct,oc->bto', x_ncl[:, :, :T], w0)
         + jnp.einsum('bct,oc->bto', x_ncl[:, :, 1:], w1)
         + params['conv_b'][None, None, :])
    inp = jnp.maximum(y, 0.0)                       # (B, T, C_out)
    for l in range(NUM_LAYERS):
        wih, whh = params['w_ih'][l], params['w_hh'][l]
        bias = params['b_ih'][l] + params['b_hh'][l]
        h, c = h0[l], c0[l]
        outs = []
        for t in range(T):
            gates = inp[:, t, :] @ wih.T + h @ whh.T + bias
            i_g = jax.nn.sigmoid(gates[:, :H])
            f_g = jax.nn.sigmoid(gates[:, H:2 * H])
            g_g = jnp.tanh(gates[:, 2 * H:3 * H])
            o_g = jax.nn.sigmoid(gates[:, 3 * H:])
            c = f_g * c + i_g * g_g
            h = o_g * jnp.tanh(c)
            outs.append(h)
        inp = jnp.stack(outs, axis=1)
    return inp[:, -1, :] @ params['fc_w'].T + params['fc_b'][None, :]


if __name__ == "__main__":
    key = jax.random.PRNGKey(0)
    kp, kx, kh, kc = jax.random.split(key, 4)
    params = init_params(kp)
    x = jax.random.normal(kx, (BATCH, IN_CHANNELS, LENGTH), jnp.float32)
    # The PyTorch forward draws h_0 / c_0 with torch.randn each call; here they
    # are deterministic normal draws passed in as kernel inputs.
    h0 = jax.random.normal(kh, (NUM_LAYERS, BATCH, HIDDEN_SIZE), jnp.float32)
    c0 = jax.random.normal(kc, (NUM_LAYERS, BATCH, HIDDEN_SIZE), jnp.float32)

    out = jax.block_until_ready(net_forward(x, params, h0, c0))
    assert out.shape == (BATCH, OUTPUT_SIZE) and out.dtype == jnp.float32

    ref = net_reference(x, params, h0, c0)
    np.testing.assert_allclose(np.asarray(out), np.asarray(ref),
                               rtol=1e-3, atol=1e-3)
    print("KERNEL_OK")
</pallas_src>

<mosaic_0001>
module attributes {stable_mosaic.version = 11 : i64} {
  func.func @net_kernel(%arg0: memref<16x8xf32, #tpu.memory_space<vmem>>, %arg1: memref<8x32xf32, #tpu.memory_space<vmem>>, %arg2: memref<1x32xf32, #tpu.memory_space<vmem>>, %arg3: memref<2x64x128xf32, #tpu.memory_space<vmem>>, %arg4: memref<2x1x128xf32, #tpu.memory_space<vmem>>, %arg5: memref<2x2x32xf32, #tpu.memory_space<vmem>>, %arg6: memref<2x2x32xf32, #tpu.memory_space<vmem>>, %arg7: memref<32x1xf32, #tpu.memory_space<vmem>>, %arg8: memref<1x1xf32, #tpu.memory_space<vmem>>, %arg9: memref<2x1xf32, #tpu.memory_space<vmem>>) attributes {dimension_semantics = [], scalar_prefetch = 0 : i64, scratch_operands = 0 : i64, tpu.core_type = #tpu.core_type<tc>} {
    %c0 = arith.constant 0 : index
    %c0_0 = arith.constant 0 : index
    %0 = vector.load %arg0[%c0, %c0_0] : memref<16x8xf32, #tpu.memory_space<vmem>>, vector<16x8xf32>
    %c0_1 = arith.constant 0 : index
    %c0_2 = arith.constant 0 : index
    %1 = vector.load %arg1[%c0_1, %c0_2] : memref<8x32xf32, #tpu.memory_space<vmem>>, vector<8x32xf32>
    %cst = arith.constant dense<0.000000e+00> : vector<16x32xf32>
    %2 = tpu.matmul %0, %1, %cst {dimension_numbers = #tpu.dot_dimension_numbers<[1], [0], [0], [1], [0, 0, 1, 1], [], []>} : vector<16x8xf32>, vector<8x32xf32>, vector<16x32xf32> -> vector<16x32xf32>
    %c0_3 = arith.constant 0 : index
    %c0_4 = arith.constant 0 : index
    %3 = vector.load %arg2[%c0_3, %c0_4] : memref<1x32xf32, #tpu.memory_space<vmem>>, vector<1x32xf32>
    %4 = vector.broadcast %3 : vector<1x32xf32> to vector<16x32xf32>
    %5 = arith.addf %2, %4 : vector<16x32xf32>
    %cst_5 = arith.constant 0.000000e+00 : f32
    %6 = vector.broadcast %cst_5 : f32 to vector<16x32xf32>
    %7 = arith.maximumf %5, %6 : vector<16x32xf32>
    %8 = vector.extract_strided_slice %7 {offsets = [0, 0], sizes = [2, 32], strides = [1, 1]} : vector<16x32xf32> to vector<2x32xf32>
    %9 = vector.extract_strided_slice %7 {offsets = [2, 0], sizes = [2, 32], strides = [1, 1]} : vector<16x32xf32> to vector<2x32xf32>
    %10 = vector.extract_strided_slice %7 {offsets = [4, 0], sizes = [2, 32], strides = [1, 1]} : vector<16x32xf32> to vector<2x32xf32>
    %11 = vector.extract_strided_slice %7 {offsets = [6, 0], sizes = [2, 32], strides = [1, 1]} : vector<16x32xf32> to vector<2x32xf32>
    %12 = vector.extract_strided_slice %7 {offsets = [8, 0], sizes = [2, 32], strides = [1, 1]} : vector<16x32xf32> to vector<2x32xf32>
    %13 = vector.extract_strided_slice %7 {offsets = [10, 0], sizes = [2, 32], strides = [1, 1]} : vector<16x32xf32> to vector<2x32xf32>
    %14 = vector.extract_strided_slice %7 {offsets = [12, 0], sizes = [2, 32], strides = [1, 1]} : vector<16x32xf32> to vector<2x32xf32>
    %15 = vector.extract_strided_slice %7 {offsets = [14, 0], sizes = [2, 32], strides = [1, 1]} : vector<16x32xf32> to vector<2x32xf32>
    %c0_6 = arith.constant 0 : index
    %c0_7 = arith.constant 0 : index
    %c0_8 = arith.constant 0 : index
    %16 = vector.load %arg3[%c0_6, %c0_7, %c0_8] : memref<2x64x128xf32, #tpu.memory_space<vmem>>, vector<1x64x128xf32>
    %17 = vector.shape_cast %16 : vector<1x64x128xf32> to vector<64x128xf32>
    %c0_9 = arith.constant 0 : index
    %c0_10 = arith.constant 0 : index
    %c0_11 = arith.constant 0 : index
    %18 = vector.load %arg4[%c0_9, %c0_10, %c0_11] : memref<2x1x128xf32, #tpu.memory_space<vmem>>, vector<1x1x128xf32>
    %19 = vector.shape_cast %18 : vector<1x1x128xf32> to vector<1x128xf32>
    %c0_12 = arith.constant 0 : index
    %c0_13 = arith.constant 0 : index
    %c0_14 = arith.constant 0 : index
    %20 = vector.load %arg5[%c0_12, %c0_13, %c0_14] : memref<2x2x32xf32, #tpu.memory_space<vmem>>, vector<1x2x32xf32>
    %21 = vector.shape_cast %20 : vector<1x2x32xf32> to vector<2x32xf32>
    %c0_15 = arith.constant 0 : index
    %c0_16 = arith.constant 0 : index
    %c0_17 = arith.constant 0 : index
    %22 = vector.load %arg6[%c0_15, %c0_16, %c0_17] : memref<2x2x32xf32, #tpu.memory_space<vmem>>, vector<1x2x32xf32>
    %23 = vector.shape_cast %22 : vector<1x2x32xf32> to vector<2x32xf32>
    %24 = tpu.concatenate %8, %21 in 1 : vector<2x32xf32>, vector<2x32xf32> -> vector<2x64xf32>
    %cst_18 = arith.constant dense<0.000000e+00> : vector<2x128xf32>
    %25 = tpu.matmul %24, %17, %cst_18 {dimension_numbers = #tpu.dot_dimension_numbers<[1], [0], [0], [1], [0, 0, 1, 1], [], []>} : vector<2x64xf32>, vector<64x128xf32>, vector<2x128xf32> -> vector<2x128xf32>
    %26 = vector.broadcast %19 : vector<1x128xf32> to vector<2x128xf32>
    %27 = arith.addf %25, %26 : vector<2x128xf32>
    %28 = arith.negf %27 : vector<2x128xf32>
    %29 = math.exp %28 : vector<2x128xf32>
    %cst_19 = arith.constant 1.000000e+00 : f32
    %30 = vector.broadcast %cst_19 : f32 to vector<2x128xf32>
    %31 = arith.addf %30, %29 : vector<2x128xf32>
    %32 = arith.divf %30, %31 : vector<2x128xf32>
    %33 = math.tanh %27 : vector<2x128xf32>
    %34 = vector.extract_strided_slice %32 {offsets = [0, 0], sizes = [2, 32], strides = [1, 1]} : vector<2x128xf32> to vector<2x32xf32>
    %35 = vector.extract_strided_slice %32 {offsets = [0, 32], sizes = [2, 32], strides = [1, 1]} : vector<2x128xf32> to vector<2x32xf32>
    %36 = vector.extract_strided_slice %33 {offsets = [0, 64], sizes = [2, 32], strides = [1, 1]} : vector<2x128xf32> to vector<2x32xf32>
    %37 = vector.extract_strided_slice %32 {offsets = [0, 96], sizes = [2, 32], strides = [1, 1]} : vector<2x128xf32> to vector<2x32xf32>
    %38 = arith.mulf %35, %23 : vector<2x32xf32>
    %39 = arith.mulf %34, %36 : vector<2x32xf32>
    %40 = arith.addf %38, %39 : vector<2x32xf32>
    %41 = math.tanh %40 : vector<2x32xf32>
    %42 = arith.mulf %37, %41 : vector<2x32xf32>
    %43 = tpu.concatenate %9, %42 in 1 : vector<2x32xf32>, vector<2x32xf32> -> vector<2x64xf32>
    %cst_20 = arith.constant dense<0.000000e+00> : vector<2x128xf32>
    %44 = tpu.matmul %43, %17, %cst_20 {dimension_numbers = #tpu.dot_dimension_numbers<[1], [0], [0], [1], [0, 0, 1, 1], [], []>} : vector<2x64xf32>, vector<64x128xf32>, vector<2x128xf32> -> vector<2x128xf32>
    %45 = vector.broadcast %19 : vector<1x128xf32> to vector<2x128xf32>
    %46 = arith.addf %44, %45 : vector<2x128xf32>
    %47 = arith.negf %46 : vector<2x128xf32>
    %48 = math.exp %47 : vector<2x128xf32>
    %cst_21 = arith.constant 1.000000e+00 : f32
    %49 = vector.broadcast %cst_21 : f32 to vector<2x128xf32>
    %50 = arith.addf %49, %48 : vector<2x128xf32>
    %51 = arith.divf %49, %50 : vector<2x128xf32>
    %52 = math.tanh %46 : vector<2x128xf32>
    %53 = vector.extract_strided_slice %51 {offsets = [0, 0], sizes = [2, 32], strides = [1, 1]} : vector<2x128xf32> to vector<2x32xf32>
    %54 = vector.extract_strided_slice %51 {offsets = [0, 32], sizes = [2, 32], strides = [1, 1]} : vector<2x128xf32> to vector<2x32xf32>
    %55 = vector.extract_strided_slice %52 {offsets = [0, 64], sizes = [2, 32], strides = [1, 1]} : vector<2x128xf32> to vector<2x32xf32>
    %56 = vector.extract_strided_slice %51 {offsets = [0, 96], sizes = [2, 32], strides = [1, 1]} : vector<2x128xf32> to vector<2x32xf32>
    %57 = arith.mulf %54, %40 : vector<2x32xf32>
    %58 = arith.mulf %53, %55 : vector<2x32xf32>
    %59 = arith.addf %57, %58 : vector<2x32xf32>
    %60 = math.tanh %59 : vector<2x32xf32>
    %61 = arith.mulf %56, %60 : vector<2x32xf32>
    %62 = tpu.concatenate %10, %61 in 1 : vector<2x32xf32>, vector<2x32xf32> -> vector<2x64xf32>
    %cst_22 = arith.constant dense<0.000000e+00> : vector<2x128xf32>
    %63 = tpu.matmul %62, %17, %cst_22 {dimension_numbers = #tpu.dot_dimension_numbers<[1], [0], [0], [1], [0, 0, 1, 1], [], []>} : vector<2x64xf32>, vector<64x128xf32>, vector<2x128xf32> -> vector<2x128xf32>
    %64 = vector.broadcast %19 : vector<1x128xf32> to vector<2x128xf32>
    %65 = arith.addf %63, %64 : vector<2x128xf32>
    %66 = arith.negf %65 : vector<2x128xf32>
    %67 = math.exp %66 : vector<2x128xf32>
    %cst_23 = arith.constant 1.000000e+00 : f32
    %68 = vector.broadcast %cst_23 : f32 to vector<2x128xf32>
    %69 = arith.addf %68, %67 : vector<2x128xf32>
    %70 = arith.divf %68, %69 : vector<2x128xf32>
    %71 = math.tanh %65 : vector<2x128xf32>
    %72 = vector.extract_strided_slice %70 {offsets = [0, 0], sizes = [2, 32], strides = [1, 1]} : vector<2x128xf32> to vector<2x32xf32>
    %73 = vector.extract_strided_slice %70 {offsets = [0, 32], sizes = [2, 32], strides = [1, 1]} : vector<2x128xf32> to vector<2x32xf32>
    %74 = vector.extract_strided_slice %71 {offsets = [0, 64], sizes = [2, 32], strides = [1, 1]} : vector<2x128xf32> to vector<2x32xf32>
    %75 = vector.extract_strided_slice %70 {offsets = [0, 96], sizes = [2, 32], strides = [1, 1]} : vector<2x128xf32> to vector<2x32xf32>
    %76 = arith.mulf %73, %59 : vector<2x32xf32>
    %77 = arith.mulf %72, %74 : vector<2x32xf32>
    %78 = arith.addf %76, %77 : vector<2x32xf32>
    %79 = math.tanh %78 : vector<2x32xf32>
    %80 = arith.mulf %75, %79 : vector<2x32xf32>
    %81 = tpu.concatenate %11, %80 in 1 : vector<2x32xf32>, vector<2x32xf32> -> vector<2x64xf32>
    %cst_24 = arith.constant dense<0.000000e+00> : vector<2x128xf32>
    %82 = tpu.matmul %81, %17, %cst_24 {dimension_numbers = #tpu.dot_dimension_numbers<[1], [0], [0], [1], [0, 0, 1, 1], [], []>} : vector<2x64xf32>, vector<64x128xf32>, vector<2x128xf32> -> vector<2x128xf32>
    %83 = vector.broadcast %19 : vector<1x128xf32> to vector<2x128xf32>
    %84 = arith.addf %82, %83 : vector<2x128xf32>
    %85 = arith.negf %84 : vector<2x128xf32>
    %86 = math.exp %85 : vector<2x128xf32>
    %cst_25 = arith.constant 1.000000e+00 : f32
    %87 = vector.broadcast %cst_25 : f32 to vector<2x128xf32>
    %88 = arith.addf %87, %86 : vector<2x128xf32>
    %89 = arith.divf %87, %88 : vector<2x128xf32>
    %90 = math.tanh %84 : vector<2x128xf32>
    %91 = vector.extract_strided_slice %89 {offsets = [0, 0], sizes = [2, 32], strides = [1, 1]} : vector<2x128xf32> to vector<2x32xf32>
    %92 = vector.extract_strided_slice %89 {offsets = [0, 32], sizes = [2, 32], strides = [1, 1]} : vector<2x128xf32> to vector<2x32xf32>
    %93 = vector.extract_strided_slice %90 {offsets = [0, 64], sizes = [2, 32], strides = [1, 1]} : vector<2x128xf32> to vector<2x32xf32>
    %94 = vector.extract_strided_slice %89 {offsets = [0, 96], sizes = [2, 32], strides = [1, 1]} : vector<2x128xf32> to vector<2x32xf32>
    %95 = arith.mulf %92, %78 : vector<2x32xf32>
    %96 = arith.mulf %91, %93 : vector<2x32xf32>
    %97 = arith.addf %95, %96 : vector<2x32xf32>
    %98 = math.tanh %97 : vector<2x32xf32>
    %99 = arith.mulf %94, %98 : vector<2x32xf32>
    %100 = tpu.concatenate %12, %99 in 1 : vector<2x32xf32>, vector<2x32xf32> -> vector<2x64xf32>
    %cst_26 = arith.constant dense<0.000000e+00> : vector<2x128xf32>
    %101 = tpu.matmul %100, %17, %cst_26 {dimension_numbers = #tpu.dot_dimension_numbers<[1], [0], [0], [1], [0, 0, 1, 1], [], []>} : vector<2x64xf32>, vector<64x128xf32>, vector<2x128xf32> -> vector<2x128xf32>
    %102 = vector.broadcast %19 : vector<1x128xf32> to vector<2x128xf32>
    %103 = arith.addf %101, %102 : vector<2x128xf32>
    %104 = arith.negf %103 : vector<2x128xf32>
    %105 = math.exp %104 : vector<2x128xf32>
    %cst_27 = arith.constant 1.000000e+00 : f32
    %106 = vector.broadcast %cst_27 : f32 to vector<2x128xf32>
    %107 = arith.addf %106, %105 : vector<2x128xf32>
    %108 = arith.divf %106, %107 : vector<2x128xf32>
    %109 = math.tanh %103 : vector<2x128xf32>
    %110 = vector.extract_strided_slice %108 {offsets = [0, 0], sizes = [2, 32], strides = [1, 1]} : vector<2x128xf32> to vector<2x32xf32>
    %111 = vector.extract_strided_slice %108 {offsets = [0, 32], sizes = [2, 32], strides = [1, 1]} : vector<2x128xf32> to vector<2x32xf32>
    %112 = vector.extract_strided_slice %109 {offsets = [0, 64], sizes = [2, 32], strides = [1, 1]} : vector<2x128xf32> to vector<2x32xf32>
    %113 = vector.extract_strided_slice %108 {offsets = [0, 96], sizes = [2, 32], strides = [1, 1]} : vector<2x128xf32> to vector<2x32xf32>
    %114 = arith.mulf %111, %97 : vector<2x32xf32>
    %115 = arith.mulf %110, %112 : vector<2x32xf32>
    %116 = arith.addf %114, %115 : vector<2x32xf32>
    %117 = math.tanh %116 : vector<2x32xf32>
    %118 = arith.mulf %113, %117 : vector<2x32xf32>
    %119 = tpu.concatenate %13, %118 in 1 : vector<2x32xf32>, vector<2x32xf32> -> vector<2x64xf32>
    %cst_28 = arith.constant dense<0.000000e+00> : vector<2x128xf32>
    %120 = tpu.matmul %119, %17, %cst_28 {dimension_numbers = #tpu.dot_dimension_numbers<[1], [0], [0], [1], [0, 0, 1, 1], [], []>} : vector<2x64xf32>, vector<64x128xf32>, vector<2x128xf32> -> vector<2x128xf32>
    %121 = vector.broadcast %19 : vector<1x128xf32> to vector<2x128xf32>
    %122 = arith.addf %120, %121 : vector<2x128xf32>
    %123 = arith.negf %122 : vector<2x128xf32>
    %124 = math.exp %123 : vector<2x128xf32>
    %cst_29 = arith.constant 1.000000e+00 : f32
    %125 = vector.broadcast %cst_29 : f32 to vector<2x128xf32>
    %126 = arith.addf %125, %124 : vector<2x128xf32>
    %127 = arith.divf %125, %126 : vector<2x128xf32>
    %128 = math.tanh %122 : vector<2x128xf32>
    %129 = vector.extract_strided_slice %127 {offsets = [0, 0], sizes = [2, 32], strides = [1, 1]} : vector<2x128xf32> to vector<2x32xf32>
    %130 = vector.extract_strided_slice %127 {offsets = [0, 32], sizes = [2, 32], strides = [1, 1]} : vector<2x128xf32> to vector<2x32xf32>
    %131 = vector.extract_strided_slice %128 {offsets = [0, 64], sizes = [2, 32], strides = [1, 1]} : vector<2x128xf32> to vector<2x32xf32>
    %132 = vector.extract_strided_slice %127 {offsets = [0, 96], sizes = [2, 32], strides = [1, 1]} : vector<2x128xf32> to vector<2x32xf32>
    %133 = arith.mulf %130, %116 : vector<2x32xf32>
    %134 = arith.mulf %129, %131 : vector<2x32xf32>
    %135 = arith.addf %133, %134 : vector<2x32xf32>
    %136 = math.tanh %135 : vector<2x32xf32>
    %137 = arith.mulf %132, %136 : vector<2x32xf32>
    %138 = tpu.concatenate %14, %137 in 1 : vector<2x32xf32>, vector<2x32xf32> -> vector<2x64xf32>
    %cst_30 = arith.constant dense<0.000000e+00> : vector<2x128xf32>
    %139 = tpu.matmul %138, %17, %cst_30 {dimension_numbers = #tpu.dot_dimension_numbers<[1], [0], [0], [1], [0, 0, 1, 1], [], []>} : vector<2x64xf32>, vector<64x128xf32>, vector<2x128xf32> -> vector<2x128xf32>
    %140 = vector.broadcast %19 : vector<1x128xf32> to vector<2x128xf32>
    %141 = arith.addf %139, %140 : vector<2x128xf32>
    %142 = arith.negf %141 : vector<2x128xf32>
    %143 = math.exp %142 : vector<2x128xf32>
    %cst_31 = arith.constant 1.000000e+00 : f32
    %144 = vector.broadcast %cst_31 : f32 to vector<2x128xf32>
    %145 = arith.addf %144, %143 : vector<2x128xf32>
    %146 = arith.divf %144, %145 : vector<2x128xf32>
    %147 = math.tanh %141 : vector<2x128xf32>
    %148 = vector.extract_strided_slice %146 {offsets = [0, 0], sizes = [2, 32], strides = [1, 1]} : vector<2x128xf32> to vector<2x32xf32>
    %149 = vector.extract_strided_slice %146 {offsets = [0, 32], sizes = [2, 32], strides = [1, 1]} : vector<2x128xf32> to vector<2x32xf32>
    %150 = vector.extract_strided_slice %147 {offsets = [0, 64], sizes = [2, 32], strides = [1, 1]} : vector<2x128xf32> to vector<2x32xf32>
    %151 = vector.extract_strided_slice %146 {offsets = [0, 96], sizes = [2, 32], strides = [1, 1]} : vector<2x128xf32> to vector<2x32xf32>
    %152 = arith.mulf %149, %135 : vector<2x32xf32>
    %153 = arith.mulf %148, %150 : vector<2x32xf32>
    %154 = arith.addf %152, %153 : vector<2x32xf32>
    %155 = math.tanh %154 : vector<2x32xf32>
    %156 = arith.mulf %151, %155 : vector<2x32xf32>
    %157 = tpu.concatenate %15, %156 in 1 : vector<2x32xf32>, vector<2x32xf32> -> vector<2x64xf32>
    %cst_32 = arith.constant dense<0.000000e+00> : vector<2x128xf32>
    %158 = tpu.matmul %157, %17, %cst_32 {dimension_numbers = #tpu.dot_dimension_numbers<[1], [0], [0], [1], [0, 0, 1, 1], [], []>} : vector<2x64xf32>, vector<64x128xf32>, vector<2x128xf32> -> vector<2x128xf32>
    %159 = vector.broadcast %19 : vector<1x128xf32> to vector<2x128xf32>
    %160 = arith.addf %158, %159 : vector<2x128xf32>
    %161 = arith.negf %160 : vector<2x128xf32>
    %162 = math.exp %161 : vector<2x128xf32>
    %cst_33 = arith.constant 1.000000e+00 : f32
    %163 = vector.broadcast %cst_33 : f32 to vector<2x128xf32>
    %164 = arith.addf %163, %162 : vector<2x128xf32>
    %165 = arith.divf %163, %164 : vector<2x128xf32>
    %166 = math.tanh %160 : vector<2x128xf32>
    %167 = vector.extract_strided_slice %165 {offsets = [0, 0], sizes = [2, 32], strides = [1, 1]} : vector<2x128xf32> to vector<2x32xf32>
    %168 = vector.extract_strided_slice %165 {offsets = [0, 32], sizes = [2, 32], strides = [1, 1]} : vector<2x128xf32> to vector<2x32xf32>
    %169 = vector.extract_strided_slice %166 {offsets = [0, 64], sizes = [2, 32], strides = [1, 1]} : vector<2x128xf32> to vector<2x32xf32>
    %170 = vector.extract_strided_slice %165 {offsets = [0, 96], sizes = [2, 32], strides = [1, 1]} : vector<2x128xf32> to vector<2x32xf32>
    %171 = arith.mulf %168, %154 : vector<2x32xf32>
    %172 = arith.mulf %167, %169 : vector<2x32xf32>
    %173 = arith.addf %171, %172 : vector<2x32xf32>
    %174 = math.tanh %173 : vector<2x32xf32>
    %175 = arith.mulf %170, %174 : vector<2x32xf32>
    %c1 = arith.constant 1 : index
    %c0_34 = arith.constant 0 : index
    %c0_35 = arith.constant 0 : index
    %176 = vector.load %arg3[%c1, %c0_34, %c0_35] : memref<2x64x128xf32, #tpu.memory_space<vmem>>, vector<1x64x128xf32>
    %177 = vector.shape_cast %176 : vector<1x64x128xf32> to vector<64x128xf32>
    %c1_36 = arith.constant 1 : index
    %c0_37 = arith.constant 0 : index
    %c0_38 = arith.constant 0 : index
    %178 = vector.load %arg4[%c1_36, %c0_37, %c0_38] : memref<2x1x128xf32, #tpu.memory_space<vmem>>, vector<1x1x128xf32>
    %179 = vector.shape_cast %178 : vector<1x1x128xf32> to vector<1x128xf32>
    %c1_39 = arith.constant 1 : index
    %c0_40 = arith.constant 0 : index
    %c0_41 = arith.constant 0 : index
    %180 = vector.load %arg5[%c1_39, %c0_40, %c0_41] : memref<2x2x32xf32, #tpu.memory_space<vmem>>, vector<1x2x32xf32>
    %181 = vector.shape_cast %180 : vector<1x2x32xf32> to vector<2x32xf32>
    %c1_42 = arith.constant 1 : index
    %c0_43 = arith.constant 0 : index
    %c0_44 = arith.constant 0 : index
    %182 = vector.load %arg6[%c1_42, %c0_43, %c0_44] : memref<2x2x32xf32, #tpu.memory_space<vmem>>, vector<1x2x32xf32>
    %183 = vector.shape_cast %182 : vector<1x2x32xf32> to vector<2x32xf32>
    %184 = tpu.concatenate %42, %181 in 1 : vector<2x32xf32>, vector<2x32xf32> -> vector<2x64xf32>
    %cst_45 = arith.constant dense<0.000000e+00> : vector<2x128xf32>
    %185 = tpu.matmul %184, %177, %cst_45 {dimension_numbers = #tpu.dot_dimension_numbers<[1], [0], [0], [1], [0, 0, 1, 1], [], []>} : vector<2x64xf32>, vector<64x128xf32>, vector<2x128xf32> -> vector<2x128xf32>
    %186 = vector.broadcast %179 : vector<1x128xf32> to vector<2x128xf32>
    %187 = arith.addf %185, %186 : vector<2x128xf32>
    %188 = arith.negf %187 : vector<2x128xf32>
    %189 = math.exp %188 : vector<2x128xf32>
    %cst_46 = arith.constant 1.000000e+00 : f32
    %190 = vector.broadcast %cst_46 : f32 to vector<2x128xf32>
    %191 = arith.addf %190, %189 : vector<2x128xf32>
    %192 = arith.divf %190, %191 : vector<2x128xf32>
    %193 = math.tanh %187 : vector<2x128xf32>
    %194 = vector.extract_strided_slice %192 {offsets = [0, 0], sizes = [2, 32], strides = [1, 1]} : vector<2x128xf32> to vector<2x32xf32>
    %195 = vector.extract_strided_slice %192 {offsets = [0, 32], sizes = [2, 32], strides = [1, 1]} : vector<2x128xf32> to vector<2x32xf32>
    %196 = vector.extract_strided_slice %193 {offsets = [0, 64], sizes = [2, 32], strides = [1, 1]} : vector<2x128xf32> to vector<2x32xf32>
    %197 = vector.extract_strided_slice %192 {offsets = [0, 96], sizes = [2, 32], strides = [1, 1]} : vector<2x128xf32> to vector<2x32xf32>
    %198 = arith.mulf %195, %183 : vector<2x32xf32>
    %199 = arith.mulf %194, %196 : vector<2x32xf32>
    %200 = arith.addf %198, %199 : vector<2x32xf32>
    %201 = math.tanh %200 : vector<2x32xf32>
    %202 = arith.mulf %197, %201 : vector<2x32xf32>
    %203 = tpu.concatenate %61, %202 in 1 : vector<2x32xf32>, vector<2x32xf32> -> vector<2x64xf32>
    %cst_47 = arith.constant dense<0.000000e+00> : vector<2x128xf32>
    %204 = tpu.matmul %203, %177, %cst_47 {dimension_numbers = #tpu.dot_dimension_numbers<[1], [0], [0], [1], [0, 0, 1, 1], [], []>} : vector<2x64xf32>, vector<64x128xf32>, vector<2x128xf32> -> vector<2x128xf32>
    %205 = vector.broadcast %179 : vector<1x128xf32> to vector<2x128xf32>
    %206 = arith.addf %204, %205 : vector<2x128xf32>
    %207 = arith.negf %206 : vector<2x128xf32>
    %208 = math.exp %207 : vector<2x128xf32>
    %cst_48 = arith.constant 1.000000e+00 : f32
    %209 = vector.broadcast %cst_48 : f32 to vector<2x128xf32>
    %210 = arith.addf %209, %208 : vector<2x128xf32>
    %211 = arith.divf %209, %210 : vector<2x128xf32>
    %212 = math.tanh %206 : vector<2x128xf32>
    %213 = vector.extract_strided_slice %211 {offsets = [0, 0], sizes = [2, 32], strides = [1, 1]} : vector<2x128xf32> to vector<2x32xf32>
    %214 = vector.extract_strided_slice %211 {offsets = [0, 32], sizes = [2, 32], strides = [1, 1]} : vector<2x128xf32> to vector<2x32xf32>
    %215 = vector.extract_strided_slice %212 {offsets = [0, 64], sizes = [2, 32], strides = [1, 1]} : vector<2x128xf32> to vector<2x32xf32>
    %216 = vector.extract_strided_slice %211 {offsets = [0, 96], sizes = [2, 32], strides = [1, 1]} : vector<2x128xf32> to vector<2x32xf32>
    %217 = arith.mulf %214, %200 : vector<2x32xf32>
    %218 = arith.mulf %213, %215 : vector<2x32xf32>
    %219 = arith.addf %217, %218 : vector<2x32xf32>
    %220 = math.tanh %219 : vector<2x32xf32>
    %221 = arith.mulf %216, %220 : vector<2x32xf32>
    %222 = tpu.concatenate %80, %221 in 1 : vector<2x32xf32>, vector<2x32xf32> -> vector<2x64xf32>
    %cst_49 = arith.constant dense<0.000000e+00> : vector<2x128xf32>
    %223 = tpu.matmul %222, %177, %cst_49 {dimension_numbers = #tpu.dot_dimension_numbers<[1], [0], [0], [1], [0, 0, 1, 1], [], []>} : vector<2x64xf32>, vector<64x128xf32>, vector<2x128xf32> -> vector<2x128xf32>
    %224 = vector.broadcast %179 : vector<1x128xf32> to vector<2x128xf32>
    %225 = arith.addf %223, %224 : vector<2x128xf32>
    %226 = arith.negf %225 : vector<2x128xf32>
    %227 = math.exp %226 : vector<2x128xf32>
    %cst_50 = arith.constant 1.000000e+00 : f32
    %228 = vector.broadcast %cst_50 : f32 to vector<2x128xf32>
    %229 = arith.addf %228, %227 : vector<2x128xf32>
    %230 = arith.divf %228, %229 : vector<2x128xf32>
    %231 = math.tanh %225 : vector<2x128xf32>
    %232 = vector.extract_strided_slice %230 {offsets = [0, 0], sizes = [2, 32], strides = [1, 1]} : vector<2x128xf32> to vector<2x32xf32>
    %233 = vector.extract_strided_slice %230 {offsets = [0, 32], sizes = [2, 32], strides = [1, 1]} : vector<2x128xf32> to vector<2x32xf32>
    %234 = vector.extract_strided_slice %231 {offsets = [0, 64], sizes = [2, 32], strides = [1, 1]} : vector<2x128xf32> to vector<2x32xf32>
    %235 = vector.extract_strided_slice %230 {offsets = [0, 96], sizes = [2, 32], strides = [1, 1]} : vector<2x128xf32> to vector<2x32xf32>
    %236 = arith.mulf %233, %219 : vector<2x32xf32>
    %237 = arith.mulf %232, %234 : vector<2x32xf32>
    %238 = arith.addf %236, %237 : vector<2x32xf32>
    %239 = math.tanh %238 : vector<2x32xf32>
    %240 = arith.mulf %235, %239 : vector<2x32xf32>
    %241 = tpu.concatenate %99, %240 in 1 : vector<2x32xf32>, vector<2x32xf32> -> vector<2x64xf32>
    %cst_51 = arith.constant dense<0.000000e+00> : vector<2x128xf32>
    %242 = tpu.matmul %241, %177, %cst_51 {dimension_numbers = #tpu.dot_dimension_numbers<[1], [0], [0], [1], [0, 0, 1, 1], [], []>} : vector<2x64xf32>, vector<64x128xf32>, vector<2x128xf32> -> vector<2x128xf32>
    %243 = vector.broadcast %179 : vector<1x128xf32> to vector<2x128xf32>
    %244 = arith.addf %242, %243 : vector<2x128xf32>
    %245 = arith.negf %244 : vector<2x128xf32>
    %246 = math.exp %245 : vector<2x128xf32>
    %cst_52 = arith.constant 1.000000e+00 : f32
    %247 = vector.broadcast %cst_52 : f32 to vector<2x128xf32>
    %248 = arith.addf %247, %246 : vector<2x128xf32>
    %249 = arith.divf %247, %248 : vector<2x128xf32>
    %250 = math.tanh %244 : vector<2x128xf32>
    %251 = vector.extract_strided_slice %249 {offsets = [0, 0], sizes = [2, 32], strides = [1, 1]} : vector<2x128xf32> to vector<2x32xf32>
    %252 = vector.extract_strided_slice %249 {offsets = [0, 32], sizes = [2, 32], strides = [1, 1]} : vector<2x128xf32> to vector<2x32xf32>
    %253 = vector.extract_strided_slice %250 {offsets = [0, 64], sizes = [2, 32], strides = [1, 1]} : vector<2x128xf32> to vector<2x32xf32>
    %254 = vector.extract_strided_slice %249 {offsets = [0, 96], sizes = [2, 32], strides = [1, 1]} : vector<2x128xf32> to vector<2x32xf32>
    %255 = arith.mulf %252, %238 : vector<2x32xf32>
    %256 = arith.mulf %251, %253 : vector<2x32xf32>
    %257 = arith.addf %255, %256 : vector<2x32xf32>
    %258 = math.tanh %257 : vector<2x32xf32>
    %259 = arith.mulf %254, %258 : vector<2x32xf32>
    %260 = tpu.concatenate %118, %259 in 1 : vector<2x32xf32>, vector<2x32xf32> -> vector<2x64xf32>
    %cst_53 = arith.constant dense<0.000000e+00> : vector<2x128xf32>
    %261 = tpu.matmul %260, %177, %cst_53 {dimension_numbers = #tpu.dot_dimension_numbers<[1], [0], [0], [1], [0, 0, 1, 1], [], []>} : vector<2x64xf32>, vector<64x128xf32>, vector<2x128xf32> -> vector<2x128xf32>
    %262 = vector.broadcast %179 : vector<1x128xf32> to vector<2x128xf32>
    %263 = arith.addf %261, %262 : vector<2x128xf32>
    %264 = arith.negf %263 : vector<2x128xf32>
    %265 = math.exp %264 : vector<2x128xf32>
    %cst_54 = arith.constant 1.000000e+00 : f32
    %266 = vector.broadcast %cst_54 : f32 to vector<2x128xf32>
    %267 = arith.addf %266, %265 : vector<2x128xf32>
    %268 = arith.divf %266, %267 : vector<2x128xf32>
    %269 = math.tanh %263 : vector<2x128xf32>
    %270 = vector.extract_strided_slice %268 {offsets = [0, 0], sizes = [2, 32], strides = [1, 1]} : vector<2x128xf32> to vector<2x32xf32>
    %271 = vector.extract_strided_slice %268 {offsets = [0, 32], sizes = [2, 32], strides = [1, 1]} : vector<2x128xf32> to vector<2x32xf32>
    %272 = vector.extract_strided_slice %269 {offsets = [0, 64], sizes = [2, 32], strides = [1, 1]} : vector<2x128xf32> to vector<2x32xf32>
    %273 = vector.extract_strided_slice %268 {offsets = [0, 96], sizes = [2, 32], strides = [1, 1]} : vector<2x128xf32> to vector<2x32xf32>
    %274 = arith.mulf %271, %257 : vector<2x32xf32>
    %275 = arith.mulf %270, %272 : vector<2x32xf32>
    %276 = arith.addf %274, %275 : vector<2x32xf32>
    %277 = math.tanh %276 : vector<2x32xf32>
    %278 = arith.mulf %273, %277 : vector<2x32xf32>
    %279 = tpu.concatenate %137, %278 in 1 : vector<2x32xf32>, vector<2x32xf32> -> vector<2x64xf32>
    %cst_55 = arith.constant dense<0.000000e+00> : vector<2x128xf32>
    %280 = tpu.matmul %279, %177, %cst_55 {dimension_numbers = #tpu.dot_dimension_numbers<[1], [0], [0], [1], [0, 0, 1, 1], [], []>} : vector<2x64xf32>, vector<64x128xf32>, vector<2x128xf32> -> vector<2x128xf32>
    %281 = vector.broadcast %179 : vector<1x128xf32> to vector<2x128xf32>
    %282 = arith.addf %280, %281 : vector<2x128xf32>
    %283 = arith.negf %282 : vector<2x128xf32>
    %284 = math.exp %283 : vector<2x128xf32>
    %cst_56 = arith.constant 1.000000e+00 : f32
    %285 = vector.broadcast %cst_56 : f32 to vector<2x128xf32>
    %286 = arith.addf %285, %284 : vector<2x128xf32>
    %287 = arith.divf %285, %286 : vector<2x128xf32>
    %288 = math.tanh %282 : vector<2x128xf32>
    %289 = vector.extract_strided_slice %287 {offsets = [0, 0], sizes = [2, 32], strides = [1, 1]} : vector<2x128xf32> to vector<2x32xf32>
    %290 = vector.extract_strided_slice %287 {offsets = [0, 32], sizes = [2, 32], strides = [1, 1]} : vector<2x128xf32> to vector<2x32xf32>
    %291 = vector.extract_strided_slice %288 {offsets = [0, 64], sizes = [2, 32], strides = [1, 1]} : vector<2x128xf32> to vector<2x32xf32>
    %292 = vector.extract_strided_slice %287 {offsets = [0, 96], sizes = [2, 32], strides = [1, 1]} : vector<2x128xf32> to vector<2x32xf32>
    %293 = arith.mulf %290, %276 : vector<2x32xf32>
    %294 = arith.mulf %289, %291 : vector<2x32xf32>
    %295 = arith.addf %293, %294 : vector<2x32xf32>
    %296 = math.tanh %295 : vector<2x32xf32>
    %297 = arith.mulf %292, %296 : vector<2x32xf32>
    %298 = tpu.concatenate %156, %297 in 1 : vector<2x32xf32>, vector<2x32xf32> -> vector<2x64xf32>
    %cst_57 = arith.constant dense<0.000000e+00> : vector<2x128xf32>
    %299 = tpu.matmul %298, %177, %cst_57 {dimension_numbers = #tpu.dot_dimension_numbers<[1], [0], [0], [1], [0, 0, 1, 1], [], []>} : vector<2x64xf32>, vector<64x128xf32>, vector<2x128xf32> -> vector<2x128xf32>
    %300 = vector.broadcast %179 : vector<1x128xf32> to vector<2x128xf32>
    %301 = arith.addf %299, %300 : vector<2x128xf32>
    %302 = arith.negf %301 : vector<2x128xf32>
    %303 = math.exp %302 : vector<2x128xf32>
    %cst_58 = arith.constant 1.000000e+00 : f32
    %304 = vector.broadcast %cst_58 : f32 to vector<2x128xf32>
    %305 = arith.addf %304, %303 : vector<2x128xf32>
    %306 = arith.divf %304, %305 : vector<2x128xf32>
    %307 = math.tanh %301 : vector<2x128xf32>
    %308 = vector.extract_strided_slice %306 {offsets = [0, 0], sizes = [2, 32], strides = [1, 1]} : vector<2x128xf32> to vector<2x32xf32>
    %309 = vector.extract_strided_slice %306 {offsets = [0, 32], sizes = [2, 32], strides = [1, 1]} : vector<2x128xf32> to vector<2x32xf32>
    %310 = vector.extract_strided_slice %307 {offsets = [0, 64], sizes = [2, 32], strides = [1, 1]} : vector<2x128xf32> to vector<2x32xf32>
    %311 = vector.extract_strided_slice %306 {offsets = [0, 96], sizes = [2, 32], strides = [1, 1]} : vector<2x128xf32> to vector<2x32xf32>
    %312 = arith.mulf %309, %295 : vector<2x32xf32>
    %313 = arith.mulf %308, %310 : vector<2x32xf32>
    %314 = arith.addf %312, %313 : vector<2x32xf32>
    %315 = math.tanh %314 : vector<2x32xf32>
    %316 = arith.mulf %311, %315 : vector<2x32xf32>
    %317 = tpu.concatenate %175, %316 in 1 : vector<2x32xf32>, vector<2x32xf32> -> vector<2x64xf32>
    %cst_59 = arith.constant dense<0.000000e+00> : vector<2x128xf32>
    %318 = tpu.matmul %317, %177, %cst_59 {dimension_numbers = #tpu.dot_dimension_numbers<[1], [0], [0], [1], [0, 0, 1, 1], [], []>} : vector<2x64xf32>, vector<64x128xf32>, vector<2x128xf32> -> vector<2x128xf32>
    %319 = vector.broadcast %179 : vector<1x128xf32> to vector<2x128xf32>
    %320 = arith.addf %318, %319 : vector<2x128xf32>
    %321 = arith.negf %320 : vector<2x128xf32>
    %322 = math.exp %321 : vector<2x128xf32>
    %cst_60 = arith.constant 1.000000e+00 : f32
    %323 = vector.broadcast %cst_60 : f32 to vector<2x128xf32>
    %324 = arith.addf %323, %322 : vector<2x128xf32>
    %325 = arith.divf %323, %324 : vector<2x128xf32>
    %326 = math.tanh %320 : vector<2x128xf32>
    %327 = vector.extract_strided_slice %325 {offsets = [0, 0], sizes = [2, 32], strides = [1, 1]} : vector<2x128xf32> to vector<2x32xf32>
    %328 = vector.extract_strided_slice %325 {offsets = [0, 32], sizes = [2, 32], strides = [1, 1]} : vector<2x128xf32> to vector<2x32xf32>
    %329 = vector.extract_strided_slice %326 {offsets = [0, 64], sizes = [2, 32], strides = [1, 1]} : vector<2x128xf32> to vector<2x32xf32>
    %330 = vector.extract_strided_slice %325 {offsets = [0, 96], sizes = [2, 32], strides = [1, 1]} : vector<2x128xf32> to vector<2x32xf32>
    %331 = arith.mulf %328, %314 : vector<2x32xf32>
    %332 = arith.mulf %327, %329 : vector<2x32xf32>
    %333 = arith.addf %331, %332 : vector<2x32xf32>
    %334 = math.tanh %333 : vector<2x32xf32>
    %335 = arith.mulf %330, %334 : vector<2x32xf32>
    %c0_61 = arith.constant 0 : index
    %c0_62 = arith.constant 0 : index
    %336 = vector.load %arg7[%c0_61, %c0_62] : memref<32x1xf32, #tpu.memory_space<vmem>>, vector<32x1xf32>
    %cst_63 = arith.constant dense<0.000000e+00> : vector<2x1xf32>
    %337 = tpu.matmul %335, %336, %cst_63 {dimension_numbers = #tpu.dot_dimension_numbers<[1], [0], [0], [1], [0, 0, 1, 1], [], []>} : vector<2x32xf32>, vector<32x1xf32>, vector<2x1xf32> -> vector<2x1xf32>
    %c0_64 = arith.constant 0 : index
    %c0_65 = arith.constant 0 : index
    %338 = vector.load %arg8[%c0_64, %c0_65] : memref<1x1xf32, #tpu.memory_space<vmem>>, vector<1x1xf32>
    %339 = vector.broadcast %338 : vector<1x1xf32> to vector<2x1xf32>
    %340 = arith.addf %337, %339 : vector<2x1xf32>
    %c0_66 = arith.constant 0 : index
    %c0_67 = arith.constant 0 : index
    %341 = vector.load %arg9[%c0_66, %c0_67] : memref<2x1xf32, #tpu.memory_space<vmem>>, vector<2x1xf32>
    tpu.vector_store %arg9[%c0_66, %c0_67], %340 {strides = array<i32>} : memref<2x1xf32, #tpu.memory_space<vmem>>, vector<2x1xf32>,
    return
  }
}

</mosaic_0001>

<llo_original>
// kernel: tpu_custom_call.1
$region0: #{tpu_custom_call.1}
  #allocation0 [shape = 'u32[]', space=smem, size = 0x4, offset = 0x4, fixed_abs, tag = 'smem constant byte address 0x4 - core index']
  #allocation1 [shape = 'u32[144,128]{1,0:T(1,128)}', space=vmem, size = 0x12000, scoped, tag = 'internal scratch']
  #allocation2 [shape = 'f32[1,1]{1,0:T(1,128)S(1)}', space=vmem, size = 0x200, scoped, tag = 'scoped memory for tpu_custom_call.1']
  %s0 = inlined_call_operand.vmem [shape: f32[16,8], index: 0, kind: input, shape index: {}]
  %s1 = inlined_call_operand.vmem [shape: f32[8,32], index: 1, kind: input, shape index: {}]
  %s2 = inlined_call_operand.vmem [shape: f32[1,32], index: 2, kind: input, shape index: {}]
  %s3 = inlined_call_operand.hbm [shape: f32[2,64,128], index: 3, kind: input, shape index: {}]
  %s4 = inlined_call_operand.vmem [shape: f32[2,1,128], index: 4, kind: input, shape index: {}]
  %s5 = inlined_call_operand.vmem [shape: f32[2,2,32], index: 5, kind: input, shape index: {}]
  %s6 = inlined_call_operand.vmem [shape: f32[2,2,32], index: 6, kind: input, shape index: {}]
  %s7 = inlined_call_operand.vmem [shape: f32[32,1], index: 7, kind: input, shape index: {}]
  %s8 = inlined_call_operand.<no memory space> [shape: f32[1,1], index: 8, kind: input, shape index: {}]
  %s9 = inlined_call_operand.vmem [shape: f32[2,1], index: 9, kind: output, shape index: {}]
  %s10 = sld [smem:[#allocation0]]
  $region50: #{tpu_custom_call.1} parent=0
    _
  %s12 = ssub.s32 1, %s10
  %s13 = scalar_select 0, %s12, %s10
  %v14 = vstv %s8
  %15 = vst [vmem:[#allocation2] sm:$0x1] %v14
  $region1: #{tpu_custom_call.1} parent=0
    #allocation3 [shape = 'u8[65536]{0}', space=vmem, size = 0x10000, scoped, tag = 'input window, operand 3, single buffered']
    #allocation4 [shape = 's32[1]{0}', space=sflag, size = 0x4, scoped, tag = 'scoped memory for tpu_custom_call.1']
    %16 = vsyncpa [#allocation4], 0
    // Predicated region
    $region2: #{tpu_custom_call.1} parent=1 // pred_check
      _
    $region3: #{tpu_custom_call.1} parent=1 // pred_check_branch
      %18 = sbr.rel (0) target = $region5
    $region4: #{tpu_custom_call.1} parent=1 // pred_region
      _
    $region5: #{tpu_custom_call.1} parent=1 // pred_fallthru
      _
    // Predicated region
    $region6: #{tpu_custom_call.1} parent=1 // pred_check
      _
    $region7: #{tpu_custom_call.1} parent=1 // pred_check_branch
      %20 = sbr.rel (0) target = $region9
    $region8: #{tpu_custom_call.1} parent=1 // pred_region
      _
    $region9: #{tpu_custom_call.1} parent=1 // pred_fallthru
      _
    // Predicated region
    $region10: #{tpu_custom_call.1} parent=1 // pred_check
      _
    $region11: #{tpu_custom_call.1} parent=1 // pred_check_branch
      %22 = sbr.rel (0) target = $region13
    $region12: #{tpu_custom_call.1} parent=1 // pred_region
      _
    $region13: #{tpu_custom_call.1} parent=1 // pred_fallthru
      _
    // Predicated region
    $region14: #{tpu_custom_call.1} parent=1 // pred_check
      _
    $region15: #{tpu_custom_call.1} parent=1 // pred_check_branch
      %24 = sbr.rel (0) target = $region17
    $region16: #{tpu_custom_call.1} parent=1 // pred_region
      %s26 = ssub.s32 2048, 2048
      %27 = vsyncadd [#allocation4], %s26
      %s28 = sshll.u32 [#allocation3], 4
      %s29 = int_to_ptr.vmem [resolvable:$true] %s28
      %34 = dma.hbm_to_vmem [thread:$0]  %s3, 2048, %s29, [#allocation4], 128, 128, 8
    $region17: #{tpu_custom_call.1} parent=1 // pred_fallthru
      _
    // Predicated region
    $region18: #{tpu_custom_call.1} parent=1 // pred_check
      _
    $region19: #{tpu_custom_call.1} parent=1 // pred_check_branch
      %36 = sbr.rel (0) target = $region21
    $region20: #{tpu_custom_call.1} parent=1 // pred_region
      _
    $region21: #{tpu_custom_call.1} parent=1 // pred_fallthru
      _
    // Predicated region
    $region22: #{tpu_custom_call.1} parent=1 // pred_check
      _
    $region23: #{tpu_custom_call.1} parent=1 // pred_check_branch
      %38 = sbr.rel (0) target = $region25
    $region24: #{tpu_custom_call.1} parent=1 // pred_region
      _
    $region25: #{tpu_custom_call.1} parent=1 // pred_fallthru
      _
    // Predicated region
    $region26: #{tpu_custom_call.1} parent=1 // pred_check
      _
    $region27: #{tpu_custom_call.1} parent=1 // pred_check_branch
      %40 = sbr.rel (0) target = $region29
    $region28: #{tpu_custom_call.1} parent=1 // pred_region
      _
    $region29: #{tpu_custom_call.1} parent=1 // pred_fallthru
      _
    // Predicated region
    $region30: #{tpu_custom_call.1} parent=1 // pred_check
      _
    $region31: #{tpu_custom_call.1} parent=1 // pred_check_branch
      %42 = sbr.rel (0) target = $region33
    $region32: #{tpu_custom_call.1} parent=1 // pred_region
      _
    $region33: #{tpu_custom_call.1} parent=1 // pred_fallthru
      _
    // Predicated region
    $region34: #{tpu_custom_call.1} parent=1 // pred_check
      _
    $region35: #{tpu_custom_call.1} parent=1 // pred_check_branch
      %44 = sbr.rel (0) target = $region37
    $region36: #{tpu_custom_call.1} parent=1 // pred_region
      _
    $region37: #{tpu_custom_call.1} parent=1 // pred_fallthru
      _
    // Predicated region
    $region38: #{tpu_custom_call.1} parent=1 // pred_check
      _
    $region39: #{tpu_custom_call.1} parent=1 // pred_check_branch
      %46 = sbr.rel (0) target = $region41
    $region40: #{tpu_custom_call.1} parent=1 // pred_region
      %47 = dma.done [#allocation4], 2048
    $region41: #{tpu_custom_call.1} parent=1 // pred_fallthru
      _
    %v48 = vld [vmem:[%s0] sm:$0xff]
    %v49 = vld [vmem:[%s0 + $0x8] sm:$0xff]
    %v50 = vld [vmem:[%s1] sm:$0xff]
    %v51 = vld [vmem:[%s2] sm:$0x1]
    %v53 = vlaneseq
    %v54 = vshrl.u32 %v53, 7
    %v55 = vsub.s32 0, %v54
    %v56 = vrot.slane %v51, %v55
    %vm58 = vcmask 64512
    %v60 = vsel %vm58, %v48, 0
    %v63 = vsel %vm58, %v49, 0
    %65 = vmatprep.subr.mxu0 0.0
    %66 = vmatpush1.msra.mxu0 %v50
    %67 = vmatprep.subr.mxu0 0.0
    %68 = vmatpush1.msra.mxu0 0.0
    %69 = vmatprep.subr.mxu0 0.0
    %70 = vmatpush1.msra.mxu0 0.0
    %71 = vmatprep.subr.mxu0 0.0
    %72 = vmatpush1.msra.mxu0 0.0
    %73 = vmatprep.subr.mxu0 0.0
    %74 = vmatpush1.msra.mxu0 0.0
    %75 = vmatprep.subr.mxu0 0.0
    %76 = vmatpush1.msra.mxu0 0.0
    %77 = vmatprep.subr.mxu0 0.0
    %78 = vmatpush1.msra.mxu0 0.0
    %79 = vmatprep.subr.mxu0 0.0
    %80 = vmatpush1.msra.mxu0 0.0
    %81 = vmatprep.subr.mxu0 0.0
    %82 = vmatpush1.msra.mxu0 0.0
    %83 = vmatprep.subr.mxu0 0.0
    %84 = vmatpush1.msra.mxu0 0.0
    %85 = vmatprep.subr.mxu0 0.0
    %86 = vmatpush1.msra.mxu0 0.0
    %87 = vmatprep.subr.mxu0 0.0
    %88 = vmatpush1.msra.mxu0 0.0
    %89 = vmatprep.subr.mxu0 0.0
    %90 = vmatpush1.msra.mxu0 0.0
    %91 = vmatprep.subr.mxu0 0.0
    %92 = vmatpush1.msra.mxu0 0.0
    %93 = vmatprep.subr.mxu0 0.0
    %94 = vmatpush1.msra.mxu0 0.0
    %95 = vmatprep.subr.mxu0 0.0
    %96 = vmatpush1.msra.mxu0 0.0
    %97 = vmatprep.subr.mxu0 0.0
    %98 = vmatpush1.msra.mxu0 0.0
    %99 = vmatprep.subr.mxu0 0.0
    %100 = vmatpush1.msra.mxu0 0.0
    %101 = vmatprep.subr.mxu0 0.0
    %102 = vmatpush1.msra.mxu0 0.0
    %103 = vmatprep.subr.mxu0 0.0
    %104 = vmatpush1.msra.mxu0 0.0
    %105 = vmatprep.subr.mxu0 0.0
    %106 = vmatpush1.msra.mxu0 0.0
    %107 = vmatprep.subr.mxu0 0.0
    %108 = vmatpush1.msra.mxu0 0.0
    %109 = vmatprep.subr.mxu0 0.0
    %110 = vmatpush1.msra.mxu0 0.0
    %111 = vmatprep.subr.mxu0 0.0
    %112 = vmatpush1.msra.mxu0 0.0
    %113 = vmatprep.subr.mxu0 0.0
    %114 = vmatpush1.msra.mxu0 0.0
    %115 = vmatprep.subr.mxu0 0.0
    %116 = vmatpush1.msra.mxu0 0.0
    %117 = vmatprep.subr.mxu0 0.0
    %118 = vmatpush1.msra.mxu0 0.0
    %119 = vmatprep.subr.mxu0 0.0
    %120 = vmatpush1.msra.mxu0 0.0
    %121 = vmatprep.subr.mxu0 0.0
    %122 = vmatpush1.msra.mxu0 0.0
    %123 = vmatprep.subr.mxu0 0.0
    %124 = vmatpush1.msra.mxu0 0.0
    %125 = vmatprep.subr.mxu0 0.0
    %126 = vmatpush1.msra.mxu0 0.0
    %127 = vmatprep.subr.mxu0 0.0
    %128 = vmatpush1.msra.mxu0 0.0
    %129 = vmatprep.mubr.f32.mxu0 0.0
    %130 = vmatmul.mubr.f32.gmra.mrb[0].mxu0 %v60
    %v131 = vpop.f32.mrb[0].mxu0
    %v132 = vadd.f32 %v56, %v131
    %v133 = vpop.f32.mrb[0].mxu0
    %134 = vmatprep.mubr.f32.mxu0 0.0
    %135 = vmatmul.mubr.f32.gmra.mrb[0].mxu0 %v63
    %v136 = vpop.f32.mrb[0].mxu0
    %v137 = vadd.f32 %v56, %v136
    %v138 = vpop.f32.mrb[0].mxu0
    %139 = vdwg.mxu0
    %v140 = vmax.f32 %v132, 0.0
    %v141 = vmax.f32 %v137, 0.0
    %v142 = vld [vmem:[#allocation3] sm:$0xff]
    %v143 = vld [vmem:[#allocation3 + $0x8] sm:$0xff]
    %v144 = vld [vmem:[#allocation3 + $0x10] sm:$0xff]
    %v145 = vld [vmem:[#allocation3 + $0x18] sm:$0xff]
    %v146 = vld [vmem:[#allocation3 + $0x20] sm:$0xff]
    %v147 = vld [vmem:[#allocation3 + $0x28] sm:$0xff]
    %v148 = vld [vmem:[#allocation3 + $0x30] sm:$0xff]
    %v149 = vld [vmem:[#allocation3 + $0x38] sm:$0xff]
    %v150 = vld [vmem:[%s4] sm:$0x1]
    %v151 = vld [vmem:[%s5] sm:$0x3]
    %v152 = vld [vmem:[%s6] sm:$0x3]
    %154 = vrot.lane.b32.xlu0 %v151, 32
    %v155 = vpop.permute.xlu0 %154
    %vm157 = vcmask 261120
    %v158 = vsel %vm157, %v140, %v155
    %v160 = vlaneseq
    %v161 = vshrl.u32 %v160, 7
    %v162 = vsub.s32 0, %v161
    %v163 = vrot.slane %v150, %v162
    %vm165 = vcmask 523264
    %v167 = vsel %vm165, %v158, 0
    %169 = vmatprep.subr.mxu0 0.0
    %170 = vmatpush1.msra.mxu0 %v142
    %171 = vmatprep.subr.mxu0 0.0
    %172 = vmatpush1.msra.mxu0 %v143
    %173 = vmatprep.subr.mxu0 0.0
    %174 = vmatpush1.msra.mxu0 %v144
    %175 = vmatprep.subr.mxu0 0.0
    %176 = vmatpush1.msra.mxu0 %v145
    %177 = vmatprep.subr.mxu0 0.0
    %178 = vmatpush1.msra.mxu0 %v146
    %179 = vmatprep.subr.mxu0 0.0
    %180 = vmatpush1.msra.mxu0 %v147
    %181 = vmatprep.subr.mxu0 0.0
    %182 = vmatpush1.msra.mxu0 %v148
    %183 = vmatprep.subr.mxu0 0.0
    %184 = vmatpush1.msra.mxu0 %v149
    %185 = vmatprep.subr.mxu0 0.0
    %186 = vmatpush1.msra.mxu0 0.0
    %187 = vmatprep.subr.mxu0 0.0
    %188 = vmatpush1.msra.mxu0 0.0
    %189 = vmatprep.subr.mxu0 0.0
    %190 = vmatpush1.msra.mxu0 0.0
    %191 = vmatprep.subr.mxu0 0.0
    %192 = vmatpush1.msra.mxu0 0.0
    %193 = vmatprep.subr.mxu0 0.0
    %194 = vmatpush1.msra.mxu0 0.0
    %195 = vmatprep.subr.mxu0 0.0
    %196 = vmatpush1.msra.mxu0 0.0
    %197 = vmatprep.subr.mxu0 0.0
    %198 = vmatpush1.msra.mxu0 0.0
    %199 = vmatprep.subr.mxu0 0.0
    %200 = vmatpush1.msra.mxu0 0.0
    %201 = vmatprep.subr.mxu0 0.0
    %202 = vmatpush1.msra.mxu0 0.0
    %203 = vmatprep.subr.mxu0 0.0
    %204 = vmatpush1.msra.mxu0 0.0
    %205 = vmatprep.subr.mxu0 0.0
    %206 = vmatpush1.msra.mxu0 0.0
    %207 = vmatprep.subr.mxu0 0.0
    %208 = vmatpush1.msra.mxu0 0.0
    %209 = vmatprep.subr.mxu0 0.0
    %210 = vmatpush1.msra.mxu0 0.0
    %211 = vmatprep.subr.mxu0 0.0
    %212 = vmatpush1.msra.mxu0 0.0
    %213 = vmatprep.subr.mxu0 0.0
    %214 = vmatpush1.msra.mxu0 0.0
    %215 = vmatprep.subr.mxu0 0.0
    %216 = vmatpush1.msra.mxu0 0.0
    %217 = vmatprep.subr.mxu0 0.0
    %218 = vmatpush1.msra.mxu0 0.0
    %219 = vmatprep.subr.mxu0 0.0
    %220 = vmatpush1.msra.mxu0 0.0
    %221 = vmatprep.subr.mxu0 0.0
    %222 = vmatpush1.msra.mxu0 0.0
    %223 = vmatprep.subr.mxu0 0.0
    %224 = vmatpush1.msra.mxu0 0.0
    %225 = vmatprep.subr.mxu0 0.0
    %226 = vmatpush1.msra.mxu0 0.0
    %227 = vmatprep.subr.mxu0 0.0
    %228 = vmatpush1.msra.mxu0 0.0
    %229 = vmatprep.subr.mxu0 0.0
    %230 = vmatpush1.msra.mxu0 0.0
    %231 = vmatprep.subr.mxu0 0.0
    %232 = vmatpush1.msra.mxu0 0.0
    %233 = vmatprep.mubr.f32.mxu0 0.0
    %234 = vmatmul.mubr.f32.gmra.mrb[0].mxu0 %v167
    %v235 = vpop.f32.mrb[0].mxu0
    %v236 = vadd.f32 %v163, %v235
    %v237 = vpop.f32.mrb[0].mxu0
    %238 = vdwg.mxu0
    %v239 = vxor.u32 %v236, 2147483648
    %v240 = vmul.f32 %v239, 1.442695
    %v241 = vpow.pop %v240
    %v242 = vadd.f32 %v241, 1.0
    %v243 = vrcp.pop %v242
    %v244 = vmul.f32 1.0, %v243
    %v245 = vtanh.pop %v236
    %247 = vrot.lane.b32.xlu0 %v152, 32
    %v248 = vpop.permute.xlu0 %247
    %v250 = vmul.f32 %v244, %v248
    %252 = vrot.lane.b32.xlu0 %v245, 64
    %v253 = vpop.permute.xlu0 %252
    %v255 = vmul.f32 %v244, %v253
    %257 = vrot.lane.b32.xlu0 %v255, 32
    %v258 = vpop.permute.xlu0 %257
    %v260 = vadd.f32 %v250, %v258
    %v261 = vtanh.pop %v260
    %263 = vrot.lane.b32.xlu0 %v261, 64
    %v264 = vpop.permute.xlu0 %263
    %v266 = vmul.f32 %v244, %v264
    %v268 = vrot.slane %v266, 6
    %269 = vrot.lane.b32.xlu0 %v268, 64
    %v270 = vpop.permute.xlu0 %269
    %v272 = vsel %vm157, %v140, %v270
    %v274 = vrot.slane %v272, 2
    %v275 = vsel %vm165, %v274, 0
    %277 = vmatprep.subr.mxu0 0.0
    %278 = vmatpush1.msra.mxu0 %v142
    %279 = vmatprep.subr.mxu0 0.0
    %280 = vmatpush1.msra.mxu0 %v143
    %281 = vmatprep.subr.mxu0 0.0
    %282 = vmatpush1.msra.mxu0 %v144
    %283 = vmatprep.subr.mxu0 0.0
    %284 = vmatpush1.msra.mxu0 %v145
    %285 = vmatprep.subr.mxu0 0.0
    %286 = vmatpush1.msra.mxu0 %v146
    %287 = vmatprep.subr.mxu0 0.0
    %288 = vmatpush1.msra.mxu0 %v147
    %289 = vmatprep.subr.mxu0 0.0
    %290 = vmatpush1.msra.mxu0 %v148
    %291 = vmatprep.subr.mxu0 0.0
    %292 = vmatpush1.msra.mxu0 %v149
    %293 = vmatprep.subr.mxu0 0.0
    %294 = vmatpush1.msra.mxu0 0.0
    %295 = vmatprep.subr.mxu0 0.0
    %296 = vmatpush1.msra.mxu0 0.0
    %297 = vmatprep.subr.mxu0 0.0
    %298 = vmatpush1.msra.mxu0 0.0
    %299 = vmatprep.subr.mxu0 0.0
    %300 = vmatpush1.msra.mxu0 0.0
    %301 = vmatprep.subr.mxu0 0.0
    %302 = vmatpush1.msra.mxu0 0.0
    %303 = vmatprep.subr.mxu0 0.0
    %304 = vmatpush1.msra.mxu0 0.0
    %305 = vmatprep.subr.mxu0 0.0
    %306 = vmatpush1.msra.mxu0 0.0
    %307 = vmatprep.subr.mxu0 0.0
    %308 = vmatpush1.msra.mxu0 0.0
    %309 = vmatprep.subr.mxu0 0.0
    %310 = vmatpush1.msra.mxu0 0.0
    %311 = vmatprep.subr.mxu0 0.0
    %312 = vmatpush1.msra.mxu0 0.0
    %313 = vmatprep.subr.mxu0 0.0
    %314 = vmatpush1.msra.mxu0 0.0
    %315 = vmatprep.subr.mxu0 0.0
    %316 = vmatpush1.msra.mxu0 0.0
    %317 = vmatprep.subr.mxu0 0.0
    %318 = vmatpush1.msra.mxu0 0.0
    %319 = vmatprep.subr.mxu0 0.0
    %320 = vmatpush1.msra.mxu0 0.0
    %321 = vmatprep.subr.mxu0 0.0
    %322 = vmatpush1.msra.mxu0 0.0
    %323 = vmatprep.subr.mxu0 0.0
    %324 = vmatpush1.msra.mxu0 0.0
    %325 = vmatprep.subr.mxu0 0.0
    %326 = vmatpush1.msra.mxu0 0.0
    %327 = vmatprep.subr.mxu0 0.0
    %328 = vmatpush1.msra.mxu0 0.0
    %329 = vmatprep.subr.mxu0 0.0
    %330 = vmatpush1.msra.mxu0 0.0
    %331 = vmatprep.subr.mxu0 0.0
    %332 = vmatpush1.msra.mxu0 0.0
    %333 = vmatprep.subr.mxu0 0.0
    %334 = vmatpush1.msra.mxu0 0.0
    %335 = vmatprep.subr.mxu0 0.0
    %336 = vmatpush1.msra.mxu0 0.0
    %337 = vmatprep.subr.mxu0 0.0
    %338 = vmatpush1.msra.mxu0 0.0
    %339 = vmatprep.subr.mxu0 0.0
    %340 = vmatpush1.msra.mxu0 0.0
    %341 = vmatprep.mubr.f32.mxu0 0.0
    %342 = vmatmul.mubr.f32.gmra.mrb[0].mxu0 %v275
    %v343 = vpop.f32.mrb[0].mxu0
    %v344 = vadd.f32 %v163, %v343
    %v345 = vpop.f32.mrb[0].mxu0
    %346 = vdwg.mxu0
    %v347 = vxor.u32 %v344, 2147483648
    %v348 = vmul.f32 %v347, 1.442695
    %v349 = vpow.pop %v348
    %v350 = vadd.f32 %v349, 1.0
    %v351 = vrcp.pop %v350
    %v352 = vmul.f32 1.0, %v351
    %v353 = vtanh.pop %v344
    %v354 = vmul.f32 %v352, %v260
    %356 = vrot.lane.b32.xlu0 %v353, 64
    %v357 = vpop.permute.xlu0 %356
    %v359 = vmul.f32 %v352, %v357
    %361 = vrot.lane.b32.xlu0 %v359, 32
    %v362 = vpop.permute.xlu0 %361
    %v364 = vadd.f32 %v354, %v362
    %v365 = vtanh.pop %v364
    %367 = vrot.lane.b32.xlu0 %v365, 64
    %v368 = vpop.permute.xlu0 %367
    %v370 = vmul.f32 %v352, %v368
    %v372 = vrot.slane %v370, 4
    %373 = vrot.lane.b32.xlu0 %v372, 64
    %v374 = vpop.permute.xlu0 %373
    %v376 = vsel %vm157, %v140, %v374
    %v378 = vrot.slane %v376, 4
    %v379 = vsel %vm165, %v378, 0
    %381 = vmatprep.subr.mxu0 0.0
    %382 = vmatpush1.msra.mxu0 %v142
    %383 = vmatprep.subr.mxu0 0.0
    %384 = vmatpush1.msra.mxu0 %v143
    %385 = vmatprep.subr.mxu0 0.0
    %386 = vmatpush1.msra.mxu0 %v144
    %387 = vmatprep.subr.mxu0 0.0
    %388 = vmatpush1.msra.mxu0 %v145
    %389 = vmatprep.subr.mxu0 0.0
    %390 = vmatpush1.msra.mxu0 %v146
    %391 = vmatprep.subr.mxu0 0.0
    %392 = vmatpush1.msra.mxu0 %v147
    %393 = vmatprep.subr.mxu0 0.0
    %394 = vmatpush1.msra.mxu0 %v148
    %395 = vmatprep.subr.mxu0 0.0
    %396 = vmatpush1.msra.mxu0 %v149
    %397 = vmatprep.subr.mxu0 0.0
    %398 = vmatpush1.msra.mxu0 0.0
    %399 = vmatprep.subr.mxu0 0.0
    %400 = vmatpush1.msra.mxu0 0.0
    %401 = vmatprep.subr.mxu0 0.0
    %402 = vmatpush1.msra.mxu0 0.0
    %403 = vmatprep.subr.mxu0 0.0
    %404 = vmatpush1.msra.mxu0 0.0
    %405 = vmatprep.subr.mxu0 0.0
    %406 = vmatpush1.msra.mxu0 0.0
    %407 = vmatprep.subr.mxu0 0.0
    %408 = vmatpush1.msra.mxu0 0.0
    %409 = vmatprep.subr.mxu0 0.0
    %410 = vmatpush1.msra.mxu0 0.0
    %411 = vmatprep.subr.mxu0 0.0
    %412 = vmatpush1.msra.mxu0 0.0
    %413 = vmatprep.subr.mxu0 0.0
    %414 = vmatpush1.msra.mxu0 0.0
    %415 = vmatprep.subr.mxu0 0.0
    %416 = vmatpush1.msra.mxu0 0.0
    %417 = vmatprep.subr.mxu0 0.0
    %418 = vmatpush1.msra.mxu0 0.0
    %419 = vmatprep.subr.mxu0 0.0
    %420 = vmatpush1.msra.mxu0 0.0
    %421 = vmatprep.subr.mxu0 0.0
    %422 = vmatpush1.msra.mxu0 0.0
    %423 = vmatprep.subr.mxu0 0.0
    %424 = vmatpush1.msra.mxu0 0.0
    %425 = vmatprep.subr.mxu0 0.0
    %426 = vmatpush1.msra.mxu0 0.0
    %427 = vmatprep.subr.mxu0 0.0
    %428 = vmatpush1.msra.mxu0 0.0
    %429 = vmatprep.subr.mxu0 0.0
    %430 = vmatpush1.msra.mxu0 0.0
    %431 = vmatprep.subr.mxu0 0.0
    %432 = vmatpush1.msra.mxu0 0.0
    %433 = vmatprep.subr.mxu0 0.0
    %434 = vmatpush1.msra.mxu0 0.0
    %435 = vmatprep.subr.mxu0 0.0
    %436 = vmatpush1.msra.mxu0 0.0
    %437 = vmatprep.subr.mxu0 0.0
    %438 = vmatpush1.msra.mxu0 0.0
    %439 = vmatprep.subr.mxu0 0.0
    %440 = vmatpush1.msra.mxu0 0.0
    %441 = vmatprep.subr.mxu0 0.0
    %442 = vmatpush1.msra.mxu0 0.0
    %443 = vmatprep.subr.mxu0 0.0
    %444 = vmatpush1.msra.mxu0 0.0
    %445 = vmatprep.mubr.f32.mxu0 0.0
    %446 = vmatmul.mubr.f32.gmra.mrb[0].mxu0 %v379
    %v447 = vpop.f32.mrb[0].mxu0
    %v448 = vadd.f32 %v163, %v447
    %v449 = vpop.f32.mrb[0].mxu0
    %450 = vdwg.mxu0
    %v451 = vxor.u32 %v448, 2147483648
    %v452 = vmul.f32 %v451, 1.442695
    %v453 = vpow.pop %v452
    %v454 = vadd.f32 %v453, 1.0
    %v455 = vrcp.pop %v454
    %v456 = vmul.f32 1.0, %v455
    %v457 = vtanh.pop %v448
    %v458 = vmul.f32 %v456, %v364
    %460 = vrot.lane.b32.xlu0 %v457, 64
    %v461 = vpop.permute.xlu0 %460
    %v463 = vmul.f32 %v456, %v461
    %465 = vrot.lane.b32.xlu0 %v463, 32
    %v466 = vpop.permute.xlu0 %465
    %v468 = vadd.f32 %v458, %v466
    %v469 = vtanh.pop %v468
    %471 = vrot.lane.b32.xlu0 %v469, 64
    %v472 = vpop.permute.xlu0 %471
    %v474 = vmul.f32 %v456, %v472
    %v476 = vrot.slane %v474, 2
    %477 = vrot.lane.b32.xlu0 %v476, 64
    %v478 = vpop.permute.xlu0 %477
    %v480 = vsel %vm157, %v140, %v478
    %v482 = vrot.slane %v480, 6
    %v483 = vsel %vm165, %v482, 0
    %485 = vmatprep.subr.mxu0 0.0
    %486 = vmatpush1.msra.mxu0 %v142
    %487 = vmatprep.subr.mxu0 0.0
    %488 = vmatpush1.msra.mxu0 %v143
    %489 = vmatprep.subr.mxu0 0.0
    %490 = vmatpush1.msra.mxu0 %v144
    %491 = vmatprep.subr.mxu0 0.0
    %492 = vmatpush1.msra.mxu0 %v145
    %493 = vmatprep.subr.mxu0 0.0
    %494 = vmatpush1.msra.mxu0 %v146
    %495 = vmatprep.subr.mxu0 0.0
    %496 = vmatpush1.msra.mxu0 %v147
    %497 = vmatprep.subr.mxu0 0.0
    %498 = vmatpush1.msra.mxu0 %v148
    %499 = vmatprep.subr.mxu0 0.0
    %500 = vmatpush1.msra.mxu0 %v149
    %501 = vmatprep.subr.mxu0 0.0
    %502 = vmatpush1.msra.mxu0 0.0
    %503 = vmatprep.subr.mxu0 0.0
    %504 = vmatpush1.msra.mxu0 0.0
    %505 = vmatprep.subr.mxu0 0.0
    %506 = vmatpush1.msra.mxu0 0.0
    %507 = vmatprep.subr.mxu0 0.0
    %508 = vmatpush1.msra.mxu0 0.0
    %509 = vmatprep.subr.mxu0 0.0
    %510 = vmatpush1.msra.mxu0 0.0
    %511 = vmatprep.subr.mxu0 0.0
    %512 = vmatpush1.msra.mxu0 0.0
    %513 = vmatprep.subr.mxu0 0.0
    %514 = vmatpush1.msra.mxu0 0.0
    %515 = vmatprep.subr.mxu0 0.0
    %516 = vmatpush1.msra.mxu0 0.0
    %517 = vmatprep.subr.mxu0 0.0
    %518 = vmatpush1.msra.mxu0 0.0
    %519 = vmatprep.subr.mxu0 0.0
    %520 = vmatpush1.msra.mxu0 0.0
    %521 = vmatprep.subr.mxu0 0.0
    %522 = vmatpush1.msra.mxu0 0.0
    %523 = vmatprep.subr.mxu0 0.0
    %524 = vmatpush1.msra.mxu0 0.0
    %525 = vmatprep.subr.mxu0 0.0
    %526 = vmatpush1.msra.mxu0 0.0
    %527 = vmatprep.subr.mxu0 0.0
    %528 = vmatpush1.msra.mxu0 0.0
    %529 = vmatprep.subr.mxu0 0.0
    %530 = vmatpush1.msra.mxu0 0.0
    %531 = vmatprep.subr.mxu0 0.0
    %532 = vmatpush1.msra.mxu0 0.0
    %533 = vmatprep.subr.mxu0 0.0
    %534 = vmatpush1.msra.mxu0 0.0
    %535 = vmatprep.subr.mxu0 0.0
    %536 = vmatpush1.msra.mxu0 0.0
    %537 = vmatprep.subr.mxu0 0.0
    %538 = vmatpush1.msra.mxu0 0.0
    %539 = vmatprep.subr.mxu0 0.0
    %540 = vmatpush1.msra.mxu0 0.0
    %541 = vmatprep.subr.mxu0 0.0
    %542 = vmatpush1.msra.mxu0 0.0
    %543 = vmatprep.subr.mxu0 0.0
    %544 = vmatpush1.msra.mxu0 0.0
    %545 = vmatprep.subr.mxu0 0.0
    %546 = vmatpush1.msra.mxu0 0.0
    %547 = vmatprep.subr.mxu0 0.0
    %548 = vmatpush1.msra.mxu0 0.0
    %549 = vmatprep.mubr.f32.mxu0 0.0
    %550 = vmatmul.mubr.f32.gmra.mrb[0].mxu0 %v483
    %v551 = vpop.f32.mrb[0].mxu0
    %v552 = vadd.f32 %v163, %v551
    %v553 = vpop.f32.mrb[0].mxu0
    %554 = vdwg.mxu0
    %v555 = vxor.u32 %v552, 2147483648
    %v556 = vmul.f32 %v555, 1.442695
    %v557 = vpow.pop %v556
    %v558 = vadd.f32 %v557, 1.0
    %v559 = vrcp.pop %v558
    %v560 = vmul.f32 1.0, %v559
    %v561 = vtanh.pop %v552
    %v562 = vmul.f32 %v560, %v468
    %564 = vrot.lane.b32.xlu0 %v561, 64
    %v565 = vpop.permute.xlu0 %564
    %v567 = vmul.f32 %v560, %v565
    %569 = vrot.lane.b32.xlu0 %v567, 32
    %v570 = vpop.permute.xlu0 %569
    %v572 = vadd.f32 %v562, %v570
    %v573 = vtanh.pop %v572
    %575 = vrot.lane.b32.xlu0 %v573, 64
    %v576 = vpop.permute.xlu0 %575
    %v578 = vmul.f32 %v560, %v576
    %580 = vrot.lane.b32.xlu0 %v578, 64
    %v581 = vpop.permute.xlu0 %580
    %v583 = vsel %vm157, %v141, %v581
    %v585 = vsel %vm165, %v583, 0
    %587 = vmatprep.subr.mxu0 0.0
    %588 = vmatpush1.msra.mxu0 %v142
    %589 = vmatprep.subr.mxu0 0.0
    %590 = vmatpush1.msra.mxu0 %v143
    %591 = vmatprep.subr.mxu0 0.0
    %592 = vmatpush1.msra.mxu0 %v144
    %593 = vmatprep.subr.mxu0 0.0
    %594 = vmatpush1.msra.mxu0 %v145
    %595 = vmatprep.subr.mxu0 0.0
    %596 = vmatpush1.msra.mxu0 %v146
    %597 = vmatprep.subr.mxu0 0.0
    %598 = vmatpush1.msra.mxu0 %v147
    %599 = vmatprep.subr.mxu0 0.0
    %600 = vmatpush1.msra.mxu0 %v148
    %601 = vmatprep.subr.mxu0 0.0
    %602 = vmatpush1.msra.mxu0 %v149
    %603 = vmatprep.subr.mxu0 0.0
    %604 = vmatpush1.msra.mxu0 0.0
    %605 = vmatprep.subr.mxu0 0.0
    %606 = vmatpush1.msra.mxu0 0.0
    %607 = vmatprep.subr.mxu0 0.0
    %608 = vmatpush1.msra.mxu0 0.0
    %609 = vmatprep.subr.mxu0 0.0
    %610 = vmatpush1.msra.mxu0 0.0
    %611 = vmatprep.subr.mxu0 0.0
    %612 = vmatpush1.msra.mxu0 0.0
    %613 = vmatprep.subr.mxu0 0.0
    %614 = vmatpush1.msra.mxu0 0.0
    %615 = vmatprep.subr.mxu0 0.0
    %616 = vmatpush1.msra.mxu0 0.0
    %617 = vmatprep.subr.mxu0 0.0
    %618 = vmatpush1.msra.mxu0 0.0
    %619 = vmatprep.subr.mxu0 0.0
    %620 = vmatpush1.msra.mxu0 0.0
    %621 = vmatprep.subr.mxu0 0.0
    %622 = vmatpush1.msra.mxu0 0.0
    %623 = vmatprep.subr.mxu0 0.0
    %624 = vmatpush1.msra.mxu0 0.0
    %625 = vmatprep.subr.mxu0 0.0
    %626 = vmatpush1.msra.mxu0 0.0
    %627 = vmatprep.subr.mxu0 0.0
    %628 = vmatpush1.msra.mxu0 0.0
    %629 = vmatprep.subr.mxu0 0.0
    %630 = vmatpush1.msra.mxu0 0.0
    %631 = vmatprep.subr.mxu0 0.0
    %632 = vmatpush1.msra.mxu0 0.0
    %633 = vmatprep.subr.mxu0 0.0
    %634 = vmatpush1.msra.mxu0 0.0
    %635 = vmatprep.subr.mxu0 0.0
    %636 = vmatpush1.msra.mxu0 0.0
    %637 = vmatprep.subr.mxu0 0.0
    %638 = vmatpush1.msra.mxu0 0.0
    %639 = vmatprep.subr.mxu0 0.0
    %640 = vmatpush1.msra.mxu0 0.0
    %641 = vmatprep.subr.mxu0 0.0
    %642 = vmatpush1.msra.mxu0 0.0
    %643 = vmatprep.subr.mxu0 0.0
    %644 = vmatpush1.msra.mxu0 0.0
    %645 = vmatprep.subr.mxu0 0.0
    %646 = vmatpush1.msra.mxu0 0.0
    %647 = vmatprep.subr.mxu0 0.0
    %648 = vmatpush1.msra.mxu0 0.0
    %649 = vmatprep.subr.mxu0 0.0
    %650 = vmatpush1.msra.mxu0 0.0
    %651 = vmatprep.mubr.f32.mxu0 0.0
    %652 = vmatmul.mubr.f32.gmra.mrb[0].mxu0 %v585
    %v653 = vpop.f32.mrb[0].mxu0
    %v654 = vadd.f32 %v163, %v653
    %v655 = vpop.f32.mrb[0].mxu0
    %656 = vdwg.mxu0
    %v657 = vxor.u32 %v654, 2147483648
    %v658 = vmul.f32 %v657, 1.442695
    %v659 = vpow.pop %v658
    %v660 = vadd.f32 %v659, 1.0
    %v661 = vrcp.pop %v660
    %v662 = vmul.f32 1.0, %v661
    %v663 = vtanh.pop %v654
    %v664 = vmul.f32 %v662, %v572
    %666 = vrot.lane.b32.xlu0 %v663, 64
    %v667 = vpop.permute.xlu0 %666
    %v669 = vmul.f32 %v662, %v667
    %671 = vrot.lane.b32.xlu0 %v669, 32
    %v672 = vpop.permute.xlu0 %671
    %v674 = vadd.f32 %v664, %v672
    %v675 = vtanh.pop %v674
    %677 = vrot.lane.b32.xlu0 %v675, 64
    %v678 = vpop.permute.xlu0 %677
    %v680 = vmul.f32 %v662, %v678
    %v682 = vrot.slane %v680, 6
    %683 = vrot.lane.b32.xlu0 %v682, 64
    %v684 = vpop.permute.xlu0 %683
    %v686 = vsel %vm157, %v141, %v684
    %v688 = vrot.slane %v686, 2
    %v689 = vsel %vm165, %v688, 0
    %691 = vmatprep.subr.mxu0 0.0
    %692 = vmatpush1.msra.mxu0 %v142
    %693 = vmatprep.subr.mxu0 0.0
    %694 = vmatpush1.msra.mxu0 %v143
    %695 = vmatprep.subr.mxu0 0.0
    %696 = vmatpush1.msra.mxu0 %v144
    %697 = vmatprep.subr.mxu0 0.0
    %698 = vmatpush1.msra.mxu0 %v145
    %699 = vmatprep.subr.mxu0 0.0
    %700 = vmatpush1.msra.mxu0 %v146
    %701 = vmatprep.subr.mxu0 0.0
    %702 = vmatpush1.msra.mxu0 %v147
    %703 = vmatprep.subr.mxu0 0.0
    %704 = vmatpush1.msra.mxu0 %v148
    %705 = vmatprep.subr.mxu0 0.0
    %706 = vmatpush1.msra.mxu0 %v149
    %707 = vmatprep.subr.mxu0 0.0
    %708 = vmatpush1.msra.mxu0 0.0
    %709 = vmatprep.subr.mxu0 0.0
    %710 = vmatpush1.msra.mxu0 0.0
    %711 = vmatprep.subr.mxu0 0.0
    %712 = vmatpush1.msra.mxu0 0.0
    %713 = vmatprep.subr.mxu0 0.0
    %714 = vmatpush1.msra.mxu0 0.0
    %715 = vmatprep.subr.mxu0 0.0
    %716 = vmatpush1.msra.mxu0 0.0
    %717 = vmatprep.subr.mxu0 0.0
    %718 = vmatpush1.msra.mxu0 0.0
    %719 = vmatprep.subr.mxu0 0.0
    %720 = vmatpush1.msra.mxu0 0.0
    %721 = vmatprep.subr.mxu0 0.0
    %722 = vmatpush1.msra.mxu0 0.0
    %723 = vmatprep.subr.mxu0 0.0
    %724 = vmatpush1.msra.mxu0 0.0
    %725 = vmatprep.subr.mxu0 0.0
    %726 = vmatpush1.msra.mxu0 0.0
    %727 = vmatprep.subr.mxu0 0.0
    %728 = vmatpush1.msra.mxu0 0.0
    %729 = vmatprep.subr.mxu0 0.0
    %730 = vmatpush1.msra.mxu0 0.0
    %731 = vmatprep.subr.mxu0 0.0
    %732 = vmatpush1.msra.mxu0 0.0
    %733 = vmatprep.subr.mxu0 0.0
    %734 = vmatpush1.msra.mxu0 0.0
    %735 = vmatprep.subr.mxu0 0.0
    %736 = vmatpush1.msra.mxu0 0.0
    %737 = vmatprep.subr.mxu0 0.0
    %738 = vmatpush1.msra.mxu0 0.0
    %739 = vmatprep.subr.mxu0 0.0
    %740 = vmatpush1.msra.mxu0 0.0
    %741 = vmatprep.subr.mxu0 0.0
    %742 = vmatpush1.msra.mxu0 0.0
    %743 = vmatprep.subr.mxu0 0.0
    %744 = vmatpush1.msra.mxu0 0.0
    %745 = vmatprep.subr.mxu0 0.0
    %746 = vmatpush1.msra.mxu0 0.0
    %747 = vmatprep.subr.mxu0 0.0
    %748 = vmatpush1.msra.mxu0 0.0
    %749 = vmatprep.subr.mxu0 0.0
    %750 = vmatpush1.msra.mxu0 0.0
    %751 = vmatprep.subr.mxu0 0.0
    %752 = vmatpush1.msra.mxu0 0.0
    %753 = vmatprep.subr.mxu0 0.0
    %754 = vmatpush1.msra.mxu0 0.0
    %755 = vmatprep.mubr.f32.mxu0 0.0
    %756 = vmatmul.mubr.f32.gmra.mrb[0].mxu0 %v689
    %v757 = vpop.f32.mrb[0].mxu0
    %v758 = vadd.f32 %v163, %v757
    %v759 = vpop.f32.mrb[0].mxu0
    %760 = vdwg.mxu0
    %v761 = vxor.u32 %v758, 2147483648
    %v762 = vmul.f32 %v761, 1.442695
    %v763 = vpow.pop %v762
    %v764 = vadd.f32 %v763, 1.0
    %v765 = vrcp.pop %v764
    %v766 = vmul.f32 1.0, %v765
    %v767 = vtanh.pop %v758
    %v768 = vmul.f32 %v766, %v674
    %770 = vrot.lane.b32.xlu0 %v767, 64
    %v771 = vpop.permute.xlu0 %770
    %v773 = vmul.f32 %v766, %v771
    %775 = vrot.lane.b32.xlu0 %v773, 32
    %v776 = vpop.permute.xlu0 %775
    %v778 = vadd.f32 %v768, %v776
    %v779 = vtanh.pop %v778
    %781 = vrot.lane.b32.xlu0 %v779, 64
    %v782 = vpop.permute.xlu0 %781
    %v784 = vmul.f32 %v766, %v782
    %v786 = vrot.slane %v784, 4
    %787 = vrot.lane.b32.xlu0 %v786, 64
    %v788 = vpop.permute.xlu0 %787
    %v790 = vsel %vm157, %v141, %v788
    %v792 = vrot.slane %v790, 4
    %v793 = vsel %vm165, %v792, 0
    %795 = vmatprep.subr.mxu0 0.0
    %796 = vmatpush1.msra.mxu0 %v142
    %797 = vmatprep.subr.mxu0 0.0
    %798 = vmatpush1.msra.mxu0 %v143
    %799 = vmatprep.subr.mxu0 0.0
    %800 = vmatpush1.msra.mxu0 %v144
    %801 = vmatprep.subr.mxu0 0.0
    %802 = vmatpush1.msra.mxu0 %v145
    %803 = vmatprep.subr.mxu0 0.0
    %804 = vmatpush1.msra.mxu0 %v146
    %805 = vmatprep.subr.mxu0 0.0
    %806 = vmatpush1.msra.mxu0 %v147
    %807 = vmatprep.subr.mxu0 0.0
    %808 = vmatpush1.msra.mxu0 %v148
    %809 = vmatprep.subr.mxu0 0.0
    %810 = vmatpush1.msra.mxu0 %v149
    %811 = vmatprep.subr.mxu0 0.0
    %812 = vmatpush1.msra.mxu0 0.0
    %813 = vmatprep.subr.mxu0 0.0
    %814 = vmatpush1.msra.mxu0 0.0
    %815 = vmatprep.subr.mxu0 0.0
    %816 = vmatpush1.msra.mxu0 0.0
    %817 = vmatprep.subr.mxu0 0.0
    %818 = vmatpush1.msra.mxu0 0.0
    %819 = vmatprep.subr.mxu0 0.0
    %820 = vmatpush1.msra.mxu0 0.0
    %821 = vmatprep.subr.mxu0 0.0
    %822 = vmatpush1.msra.mxu0 0.0
    %823 = vmatprep.subr.mxu0 0.0
    %824 = vmatpush1.msra.mxu0 0.0
    %825 = vmatprep.subr.mxu0 0.0
    %826 = vmatpush1.msra.mxu0 0.0
    %827 = vmatprep.subr.mxu0 0.0
    %828 = vmatpush1.msra.mxu0 0.0
    %829 = vmatprep.subr.mxu0 0.0
    %830 = vmatpush1.msra.mxu0 0.0
    %831 = vmatprep.subr.mxu0 0.0
    %832 = vmatpush1.msra.mxu0 0.0
    %833 = vmatprep.subr.mxu0 0.0
    %834 = vmatpush1.msra.mxu0 0.0
    %835 = vmatprep.subr.mxu0 0.0
    %836 = vmatpush1.msra.mxu0 0.0
    %837 = vmatprep.subr.mxu0 0.0
    %838 = vmatpush1.msra.mxu0 0.0
    %839 = vmatprep.subr.mxu0 0.0
    %840 = vmatpush1.msra.mxu0 0.0
    %841 = vmatprep.subr.mxu0 0.0
    %842 = vmatpush1.msra.mxu0 0.0
    %843 = vmatprep.subr.mxu0 0.0
    %844 = vmatpush1.msra.mxu0 0.0
    %845 = vmatprep.subr.mxu0 0.0
    %846 = vmatpush1.msra.mxu0 0.0
    %847 = vmatprep.subr.mxu0 0.0
    %848 = vmatpush1.msra.mxu0 0.0
    %849 = vmatprep.subr.mxu0 0.0
    %850 = vmatpush1.msra.mxu0 0.0
    %851 = vmatprep.subr.mxu0 0.0
    %852 = vmatpush1.msra.mxu0 0.0
    %853 = vmatprep.subr.mxu0 0.0
    %854 = vmatpush1.msra.mxu0 0.0
    %855 = vmatprep.subr.mxu0 0.0
    %856 = vmatpush1.msra.mxu0 0.0
    %857 = vmatprep.subr.mxu0 0.0
    %858 = vmatpush1.msra.mxu0 0.0
    %859 = vmatprep.mubr.f32.mxu0 0.0
    %860 = vmatmul.mubr.f32.gmra.mrb[0].mxu0 %v793
    %v861 = vpop.f32.mrb[0].mxu0
    %v862 = vadd.f32 %v163, %v861
    %v863 = vpop.f32.mrb[0].mxu0
    %864 = vdwg.mxu0
    %v865 = vxor.u32 %v862, 2147483648
    %v866 = vmul.f32 %v865, 1.442695
    %v867 = vpow.pop %v866
    %v868 = vadd.f32 %v867, 1.0
    %v869 = vrcp.pop %v868
    %v870 = vmul.f32 1.0, %v869
    %v871 = vtanh.pop %v862
    %v872 = vmul.f32 %v870, %v778
    %874 = vrot.lane.b32.xlu0 %v871, 64
    %v875 = vpop.permute.xlu0 %874
    %v877 = vmul.f32 %v870, %v875
    %879 = vrot.lane.b32.xlu0 %v877, 32
    %v880 = vpop.permute.xlu0 %879
    %v882 = vadd.f32 %v872, %v880
    %v883 = vtanh.pop %v882
    %885 = vrot.lane.b32.xlu0 %v883, 64
    %v886 = vpop.permute.xlu0 %885
    %v888 = vmul.f32 %v870, %v886
    %v890 = vrot.slane %v888, 2
    %891 = vrot.lane.b32.xlu0 %v890, 64
    %v892 = vpop.permute.xlu0 %891
    %v894 = vsel %vm157, %v141, %v892
    %v896 = vrot.slane %v894, 6
    %v897 = vsel %vm165, %v896, 0
    %899 = vmatprep.subr.mxu0 0.0
    %900 = vmatpush1.msra.mxu0 %v142
    %901 = vmatprep.subr.mxu0 0.0
    %902 = vmatpush1.msra.mxu0 %v143
    %903 = vmatprep.subr.mxu0 0.0
    %904 = vmatpush1.msra.mxu0 %v144
    %905 = vmatprep.subr.mxu0 0.0
    %906 = vmatpush1.msra.mxu0 %v145
    %907 = vmatprep.subr.mxu0 0.0
    %908 = vmatpush1.msra.mxu0 %v146
    %909 = vmatprep.subr.mxu0 0.0
    %910 = vmatpush1.msra.mxu0 %v147
    %911 = vmatprep.subr.mxu0 0.0
    %912 = vmatpush1.msra.mxu0 %v148
    %913 = vmatprep.subr.mxu0 0.0
    %914 = vmatpush1.msra.mxu0 %v149
    %915 = vmatprep.subr.mxu0 0.0
    %916 = vmatpush1.msra.mxu0 0.0
    %917 = vmatprep.subr.mxu0 0.0
    %918 = vmatpush1.msra.mxu0 0.0
    %919 = vmatprep.subr.mxu0 0.0
    %920 = vmatpush1.msra.mxu0 0.0
    %921 = vmatprep.subr.mxu0 0.0
    %922 = vmatpush1.msra.mxu0 0.0
    %923 = vmatprep.subr.mxu0 0.0
    %924 = vmatpush1.msra.mxu0 0.0
    %925 = vmatprep.subr.mxu0 0.0
    %926 = vmatpush1.msra.mxu0 0.0
    %927 = vmatprep.subr.mxu0 0.0
    %928 = vmatpush1.msra.mxu0 0.0
    %929 = vmatprep.subr.mxu0 0.0
    %930 = vmatpush1.msra.mxu0 0.0
    %931 = vmatprep.subr.mxu0 0.0
    %932 = vmatpush1.msra.mxu0 0.0
    %933 = vmatprep.subr.mxu0 0.0
    %934 = vmatpush1.msra.mxu0 0.0
    %935 = vmatprep.subr.mxu0 0.0
    %936 = vmatpush1.msra.mxu0 0.0
    %937 = vmatprep.subr.mxu0 0.0
    %938 = vmatpush1.msra.mxu0 0.0
    %939 = vmatprep.subr.mxu0 0.0
    %940 = vmatpush1.msra.mxu0 0.0
    %941 = vmatprep.subr.mxu0 0.0
    %942 = vmatpush1.msra.mxu0 0.0
    %943 = vmatprep.subr.mxu0 0.0
    %944 = vmatpush1.msra.mxu0 0.0
    %945 = vmatprep.subr.mxu0 0.0
    %946 = vmatpush1.msra.mxu0 0.0
    %947 = vmatprep.subr.mxu0 0.0
    %948 = vmatpush1.msra.mxu0 0.0
    %949 = vmatprep.subr.mxu0 0.0
    %950 = vmatpush1.msra.mxu0 0.0
    %951 = vmatprep.subr.mxu0 0.0
    %952 = vmatpush1.msra.mxu0 0.0
    %953 = vmatprep.subr.mxu0 0.0
    %954 = vmatpush1.msra.mxu0 0.0
    %955 = vmatprep.subr.mxu0 0.0
    %956 = vmatpush1.msra.mxu0 0.0
    %957 = vmatprep.subr.mxu0 0.0
    %958 = vmatpush1.msra.mxu0 0.0
    %959 = vmatprep.subr.mxu0 0.0
    %960 = vmatpush1.msra.mxu0 0.0
    %961 = vmatprep.subr.mxu0 0.0
    %962 = vmatpush1.msra.mxu0 0.0
    %963 = vmatprep.mubr.f32.mxu0 0.0
    %964 = vmatmul.mubr.f32.gmra.mrb[0].mxu0 %v897
    %v965 = vpop.f32.mrb[0].mxu0
    %v966 = vadd.f32 %v163, %v965
    %v967 = vpop.f32.mrb[0].mxu0
    %968 = vdwg.mxu0
    %v969 = vxor.u32 %v966, 2147483648
    %v970 = vmul.f32 %v969, 1.442695
    %v971 = vpow.pop %v970
    %v972 = vadd.f32 %v971, 1.0
    %v973 = vrcp.pop %v972
    %v974 = vmul.f32 1.0, %v973
    %v975 = vtanh.pop %v966
    %v976 = vmul.f32 %v974, %v882
    %978 = vrot.lane.b32.xlu0 %v975, 64
    %v979 = vpop.permute.xlu0 %978
    %v981 = vmul.f32 %v974, %v979
    %983 = vrot.lane.b32.xlu0 %v981, 32
    %v984 = vpop.permute.xlu0 %983
    %v986 = vadd.f32 %v976, %v984
    %v987 = vtanh.pop %v986
    %989 = vrot.lane.b32.xlu0 %v987, 64
    %v990 = vpop.permute.xlu0 %989
    %v992 = vmul.f32 %v974, %v990
    %s993 = scalar_lea.vmem [#allocation3], 64
    %v994 = vld [vmem:[%s993] sm:$0xff]
    %v995 = vld [vmem:[%s993 + $0x8] sm:$0xff]
    %v996 = vld [vmem:[%s993 + $0x10] sm:$0xff]
    %v997 = vld [vmem:[%s993 + $0x18] sm:$0xff]
    %v998 = vld [vmem:[%s993 + $0x20] sm:$0xff]
    %v999 = vld [vmem:[%s993 + $0x28] sm:$0xff]
    %v1000 = vld [vmem:[%s993 + $0x30] sm:$0xff]
    %v1001 = vld [vmem:[%s993 + $0x38] sm:$0xff]
    %s1002 = scalar_lea.vmem %s4, 1
    %v1003 = vld [vmem:[%s1002] sm:$0x1]
    %s1004 = scalar_lea.vmem %s5, 2
    %v1005 = vld [vmem:[%s1004] sm:$0x3]
    %s1006 = scalar_lea.vmem %s6, 2
    %v1007 = vld [vmem:[%s1006] sm:$0x3]
    %1008 = vrot.lane.b32.xlu0 %v266, 32
    %v1009 = vpop.permute.xlu0 %1008
    %1012 = vrot.lane.b32.xlu0 %v1005, 32
    %v1013 = vpop.permute.xlu0 %1012
    %v1015 = vsel %vm157, %v1009, %v1013
    %v1017 = vlaneseq
    %v1018 = vshrl.u32 %v1017, 7
    %v1019 = vsub.s32 0, %v1018
    %v1020 = vrot.slane %v1003, %v1019
    %v1023 = vsel %vm165, %v1015, 0
    %1025 = vmatprep.subr.mxu0 0.0
    %1026 = vmatpush1.msra.mxu0 %v994
    %1027 = vmatprep.subr.mxu0 0.0
    %1028 = vmatpush1.msra.mxu0 %v995
    %1029 = vmatprep.subr.mxu0 0.0
    %1030 = vmatpush1.msra.mxu0 %v996
    %1031 = vmatprep.subr.mxu0 0.0
    %1032 = vmatpush1.msra.mxu0 %v997
    %1033 = vmatprep.subr.mxu0 0.0
    %1034 = vmatpush1.msra.mxu0 %v998
    %1035 = vmatprep.subr.mxu0 0.0
    %1036 = vmatpush1.msra.mxu0 %v999
    %1037 = vmatprep.subr.mxu0 0.0
    %1038 = vmatpush1.msra.mxu0 %v1000
    %1039 = vmatprep.subr.mxu0 0.0
    %1040 = vmatpush1.msra.mxu0 %v1001
    %1041 = vmatprep.subr.mxu0 0.0
    %1042 = vmatpush1.msra.mxu0 0.0
    %1043 = vmatprep.subr.mxu0 0.0
    %1044 = vmatpush1.msra.mxu0 0.0
    %1045 = vmatprep.subr.mxu0 0.0
    %1046 = vmatpush1.msra.mxu0 0.0
    %1047 = vmatprep.subr.mxu0 0.0
    %1048 = vmatpush1.msra.mxu0 0.0
    %1049 = vmatprep.subr.mxu0 0.0
    %1050 = vmatpush1.msra.mxu0 0.0
    %1051 = vmatprep.subr.mxu0 0.0
    %1052 = vmatpush1.msra.mxu0 0.0
    %1053 = vmatprep.subr.mxu0 0.0
    %1054 = vmatpush1.msra.mxu0 0.0
    %1055 = vmatprep.subr.mxu0 0.0
    %1056 = vmatpush1.msra.mxu0 0.0
    %1057 = vmatprep.subr.mxu0 0.0
    %1058 = vmatpush1.msra.mxu0 0.0
    %1059 = vmatprep.subr.mxu0 0.0
    %1060 = vmatpush1.msra.mxu0 0.0
    %1061 = vmatprep.subr.mxu0 0.0
    %1062 = vmatpush1.msra.mxu0 0.0
    %1063 = vmatprep.subr.mxu0 0.0
    %1064 = vmatpush1.msra.mxu0 0.0
    %1065 = vmatprep.subr.mxu0 0.0
    %1066 = vmatpush1.msra.mxu0 0.0
    %1067 = vmatprep.subr.mxu0 0.0
    %1068 = vmatpush1.msra.mxu0 0.0
    %1069 = vmatprep.subr.mxu0 0.0
    %1070 = vmatpush1.msra.mxu0 0.0
    %1071 = vmatprep.subr.mxu0 0.0
    %1072 = vmatpush1.msra.mxu0 0.0
    %1073 = vmatprep.subr.mxu0 0.0
    %1074 = vmatpush1.msra.mxu0 0.0
    %1075 = vmatprep.subr.mxu0 0.0
    %1076 = vmatpush1.msra.mxu0 0.0
    %1077 = vmatprep.subr.mxu0 0.0
    %1078 = vmatpush1.msra.mxu0 0.0
    %1079 = vmatprep.subr.mxu0 0.0
    %1080 = vmatpush1.msra.mxu0 0.0
    %1081 = vmatprep.subr.mxu0 0.0
    %1082 = vmatpush1.msra.mxu0 0.0
    %1083 = vmatprep.subr.mxu0 0.0
    %1084 = vmatpush1.msra.mxu0 0.0
    %1085 = vmatprep.subr.mxu0 0.0
    %1086 = vmatpush1.msra.mxu0 0.0
    %1087 = vmatprep.subr.mxu0 0.0
    %1088 = vmatpush1.msra.mxu0 0.0
    %1089 = vmatprep.mubr.f32.mxu0 0.0
    %1090 = vmatmul.mubr.f32.gmra.mrb[0].mxu0 %v1023
    %v1091 = vpop.f32.mrb[0].mxu0
    %v1092 = vadd.f32 %v1020, %v1091
    %v1093 = vpop.f32.mrb[0].mxu0
    %1094 = vdwg.mxu0
    %v1095 = vxor.u32 %v1092, 2147483648
    %v1096 = vmul.f32 %v1095, 1.442695
    %v1097 = vpow.pop %v1096
    %v1098 = vadd.f32 %v1097, 1.0
    %v1099 = vrcp.pop %v1098
    %v1100 = vmul.f32 1.0, %v1099
    %v1101 = vtanh.pop %v1092
    %1103 = vrot.lane.b32.xlu0 %v1007, 32
    %v1104 = vpop.permute.xlu0 %1103
    %v1106 = vmul.f32 %v1100, %v1104
    %1108 = vrot.lane.b32.xlu0 %v1101, 64
    %v1109 = vpop.permute.xlu0 %1108
    %v1111 = vmul.f32 %v1100, %v1109
    %1113 = vrot.lane.b32.xlu0 %v1111, 32
    %v1114 = vpop.permute.xlu0 %1113
    %v1116 = vadd.f32 %v1106, %v1114
    %v1117 = vtanh.pop %v1116
    %1119 = vrot.lane.b32.xlu0 %v1117, 64
    %v1120 = vpop.permute.xlu0 %1119
    %v1122 = vmul.f32 %v1100, %v1120
    %1123 = vrot.lane.b32.xlu0 %v370, 32
    %v1124 = vpop.permute.xlu0 %1123
    %1127 = vrot.lane.b32.xlu0 %v1122, 64
    %v1128 = vpop.permute.xlu0 %1127
    %v1130 = vsel %vm157, %v1124, %v1128
    %v1132 = vsel %vm165, %v1130, 0
    %1134 = vmatprep.subr.mxu0 0.0
    %1135 = vmatpush1.msra.mxu0 %v994
    %1136 = vmatprep.subr.mxu0 0.0
    %1137 = vmatpush1.msra.mxu0 %v995
    %1138 = vmatprep.subr.mxu0 0.0
    %1139 = vmatpush1.msra.mxu0 %v996
    %1140 = vmatprep.subr.mxu0 0.0
    %1141 = vmatpush1.msra.mxu0 %v997
    %1142 = vmatprep.subr.mxu0 0.0
    %1143 = vmatpush1.msra.mxu0 %v998
    %1144 = vmatprep.subr.mxu0 0.0
    %1145 = vmatpush1.msra.mxu0 %v999
    %1146 = vmatprep.subr.mxu0 0.0
    %1147 = vmatpush1.msra.mxu0 %v1000
    %1148 = vmatprep.subr.mxu0 0.0
    %1149 = vmatpush1.msra.mxu0 %v1001
    %1150 = vmatprep.subr.mxu0 0.0
    %1151 = vmatpush1.msra.mxu0 0.0
    %1152 = vmatprep.subr.mxu0 0.0
    %1153 = vmatpush1.msra.mxu0 0.0
    %1154 = vmatprep.subr.mxu0 0.0
    %1155 = vmatpush1.msra.mxu0 0.0
    %1156 = vmatprep.subr.mxu0 0.0
    %1157 = vmatpush1.msra.mxu0 0.0
    %1158 = vmatprep.subr.mxu0 0.0
    %1159 = vmatpush1.msra.mxu0 0.0
    %1160 = vmatprep.subr.mxu0 0.0
    %1161 = vmatpush1.msra.mxu0 0.0
    %1162 = vmatprep.subr.mxu0 0.0
    %1163 = vmatpush1.msra.mxu0 0.0
    %1164 = vmatprep.subr.mxu0 0.0
    %1165 = vmatpush1.msra.mxu0 0.0
    %1166 = vmatprep.subr.mxu0 0.0
    %1167 = vmatpush1.msra.mxu0 0.0
    %1168 = vmatprep.subr.mxu0 0.0
    %1169 = vmatpush1.msra.mxu0 0.0
    %1170 = vmatprep.subr.mxu0 0.0
    %1171 = vmatpush1.msra.mxu0 0.0
    %1172 = vmatprep.subr.mxu0 0.0
    %1173 = vmatpush1.msra.mxu0 0.0
    %1174 = vmatprep.subr.mxu0 0.0
    %1175 = vmatpush1.msra.mxu0 0.0
    %1176 = vmatprep.subr.mxu0 0.0
    %1177 = vmatpush1.msra.mxu0 0.0
    %1178 = vmatprep.subr.mxu0 0.0
    %1179 = vmatpush1.msra.mxu0 0.0
    %1180 = vmatprep.subr.mxu0 0.0
    %1181 = vmatpush1.msra.mxu0 0.0
    %1182 = vmatprep.subr.mxu0 0.0
    %1183 = vmatpush1.msra.mxu0 0.0
    %1184 = vmatprep.subr.mxu0 0.0
    %1185 = vmatpush1.msra.mxu0 0.0
    %1186 = vmatprep.subr.mxu0 0.0
    %1187 = vmatpush1.msra.mxu0 0.0
    %1188 = vmatprep.subr.mxu0 0.0
    %1189 = vmatpush1.msra.mxu0 0.0
    %1190 = vmatprep.subr.mxu0 0.0
    %1191 = vmatpush1.msra.mxu0 0.0
    %1192 = vmatprep.subr.mxu0 0.0
    %1193 = vmatpush1.msra.mxu0 0.0
    %1194 = vmatprep.subr.mxu0 0.0
    %1195 = vmatpush1.msra.mxu0 0.0
    %1196 = vmatprep.subr.mxu0 0.0
    %1197 = vmatpush1.msra.mxu0 0.0
    %1198 = vmatprep.mubr.f32.mxu0 0.0
    %1199 = vmatmul.mubr.f32.gmra.mrb[0].mxu0 %v1132
    %v1200 = vpop.f32.mrb[0].mxu0
    %v1201 = vadd.f32 %v1020, %v1200
    %v1202 = vpop.f32.mrb[0].mxu0
    %1203 = vdwg.mxu0
    %v1204 = vxor.u32 %v1201, 2147483648
    %v1205 = vmul.f32 %v1204, 1.442695
    %v1206 = vpow.pop %v1205
    %v1207 = vadd.f32 %v1206, 1.0
    %v1208 = vrcp.pop %v1207
    %v1209 = vmul.f32 1.0, %v1208
    %v1210 = vtanh.pop %v1201
    %v1211 = vmul.f32 %v1209, %v1116
    %1213 = vrot.lane.b32.xlu0 %v1210, 64
    %v1214 = vpop.permute.xlu0 %1213
    %v1216 = vmul.f32 %v1209, %v1214
    %1218 = vrot.lane.b32.xlu0 %v1216, 32
    %v1219 = vpop.permute.xlu0 %1218
    %v1221 = vadd.f32 %v1211, %v1219
    %v1222 = vtanh.pop %v1221
    %1224 = vrot.lane.b32.xlu0 %v1222, 64
    %v1225 = vpop.permute.xlu0 %1224
    %v1227 = vmul.f32 %v1209, %v1225
    %1228 = vrot.lane.b32.xlu0 %v474, 32
    %v1229 = vpop.permute.xlu0 %1228
    %1232 = vrot.lane.b32.xlu0 %v1227, 64
    %v1233 = vpop.permute.xlu0 %1232
    %v1235 = vsel %vm157, %v1229, %v1233
    %v1237 = vsel %vm165, %v1235, 0
    %1239 = vmatprep.subr.mxu0 0.0
    %1240 = vmatpush1.msra.mxu0 %v994
    %1241 = vmatprep.subr.mxu0 0.0
    %1242 = vmatpush1.msra.mxu0 %v995
    %1243 = vmatprep.subr.mxu0 0.0
    %1244 = vmatpush1.msra.mxu0 %v996
    %1245 = vmatprep.subr.mxu0 0.0
    %1246 = vmatpush1.msra.mxu0 %v997
    %1247 = vmatprep.subr.mxu0 0.0
    %1248 = vmatpush1.msra.mxu0 %v998
    %1249 = vmatprep.subr.mxu0 0.0
    %1250 = vmatpush1.msra.mxu0 %v999
    %1251 = vmatprep.subr.mxu0 0.0
    %1252 = vmatpush1.msra.mxu0 %v1000
    %1253 = vmatprep.subr.mxu0 0.0
    %1254 = vmatpush1.msra.mxu0 %v1001
    %1255 = vmatprep.subr.mxu0 0.0
    %1256 = vmatpush1.msra.mxu0 0.0
    %1257 = vmatprep.subr.mxu0 0.0
    %1258 = vmatpush1.msra.mxu0 0.0
    %1259 = vmatprep.subr.mxu0 0.0
    %1260 = vmatpush1.msra.mxu0 0.0
    %1261 = vmatprep.subr.mxu0 0.0
    %1262 = vmatpush1.msra.mxu0 0.0
    %1263 = vmatprep.subr.mxu0 0.0
    %1264 = vmatpush1.msra.mxu0 0.0
    %1265 = vmatprep.subr.mxu0 0.0
    %1266 = vmatpush1.msra.mxu0 0.0
    %1267 = vmatprep.subr.mxu0 0.0
    %1268 = vmatpush1.msra.mxu0 0.0
    %1269 = vmatprep.subr.mxu0 0.0
    %1270 = vmatpush1.msra.mxu0 0.0
    %1271 = vmatprep.subr.mxu0 0.0
    %1272 = vmatpush1.msra.mxu0 0.0
    %1273 = vmatprep.subr.mxu0 0.0
    %1274 = vmatpush1.msra.mxu0 0.0
    %1275 = vmatprep.subr.mxu0 0.0
    %1276 = vmatpush1.msra.mxu0 0.0
    %1277 = vmatprep.subr.mxu0 0.0
    %1278 = vmatpush1.msra.mxu0 0.0
    %1279 = vmatprep.subr.mxu0 0.0
    %1280 = vmatpush1.msra.mxu0 0.0
    %1281 = vmatprep.subr.mxu0 0.0
    %1282 = vmatpush1.msra.mxu0 0.0
    %1283 = vmatprep.subr.mxu0 0.0
    %1284 = vmatpush1.msra.mxu0 0.0
    %1285 = vmatprep.subr.mxu0 0.0
    %1286 = vmatpush1.msra.mxu0 0.0
    %1287 = vmatprep.subr.mxu0 0.0
    %1288 = vmatpush1.msra.mxu0 0.0
    %1289 = vmatprep.subr.mxu0 0.0
    %1290 = vmatpush1.msra.mxu0 0.0
    %1291 = vmatprep.subr.mxu0 0.0
    %1292 = vmatpush1.msra.mxu0 0.0
    %1293 = vmatprep.subr.mxu0 0.0
    %1294 = vmatpush1.msra.mxu0 0.0
    %1295 = vmatprep.subr.mxu0 0.0
    %1296 = vmatpush1.msra.mxu0 0.0
    %1297 = vmatprep.subr.mxu0 0.0
    %1298 = vmatpush1.msra.mxu0 0.0
    %1299 = vmatprep.subr.mxu0 0.0
    %1300 = vmatpush1.msra.mxu0 0.0
    %1301 = vmatprep.subr.mxu0 0.0
    %1302 = vmatpush1.msra.mxu0 0.0
    %1303 = vmatprep.mubr.f32.mxu0 0.0
    %1304 = vmatmul.mubr.f32.gmra.mrb[0].mxu0 %v1237
    %v1305 = vpop.f32.mrb[0].mxu0
    %v1306 = vadd.f32 %v1020, %v1305
    %v1307 = vpop.f32.mrb[0].mxu0
    %1308 = vdwg.mxu0
    %v1309 = vxor.u32 %v1306, 2147483648
    %v1310 = vmul.f32 %v1309, 1.442695
    %v1311 = vpow.pop %v1310
    %v1312 = vadd.f32 %v1311, 1.0
    %v1313 = vrcp.pop %v1312
    %v1314 = vmul.f32 1.0, %v1313
    %v1315 = vtanh.pop %v1306
    %v1316 = vmul.f32 %v1314, %v1221
    %1318 = vrot.lane.b32.xlu0 %v1315, 64
    %v1319 = vpop.permute.xlu0 %1318
    %v1321 = vmul.f32 %v1314, %v1319
    %1323 = vrot.lane.b32.xlu0 %v1321, 32
    %v1324 = vpop.permute.xlu0 %1323
    %v1326 = vadd.f32 %v1316, %v1324
    %v1327 = vtanh.pop %v1326
    %1329 = vrot.lane.b32.xlu0 %v1327, 64
    %v1330 = vpop.permute.xlu0 %1329
    %v1332 = vmul.f32 %v1314, %v1330
    %1333 = vrot.lane.b32.xlu0 %v578, 32
    %v1334 = vpop.permute.xlu0 %1333
    %1337 = vrot.lane.b32.xlu0 %v1332, 64
    %v1338 = vpop.permute.xlu0 %1337
    %v1340 = vsel %vm157, %v1334, %v1338
    %v1342 = vsel %vm165, %v1340, 0
    %1344 = vmatprep.subr.mxu0 0.0
    %1345 = vmatpush1.msra.mxu0 %v994
    %1346 = vmatprep.subr.mxu0 0.0
    %1347 = vmatpush1.msra.mxu0 %v995
    %1348 = vmatprep.subr.mxu0 0.0
    %1349 = vmatpush1.msra.mxu0 %v996
    %1350 = vmatprep.subr.mxu0 0.0
    %1351 = vmatpush1.msra.mxu0 %v997
    %1352 = vmatprep.subr.mxu0 0.0
    %1353 = vmatpush1.msra.mxu0 %v998
    %1354 = vmatprep.subr.mxu0 0.0
    %1355 = vmatpush1.msra.mxu0 %v999
    %1356 = vmatprep.subr.mxu0 0.0
    %1357 = vmatpush1.msra.mxu0 %v1000
    %1358 = vmatprep.subr.mxu0 0.0
    %1359 = vmatpush1.msra.mxu0 %v1001
    %1360 = vmatprep.subr.mxu0 0.0
    %1361 = vmatpush1.msra.mxu0 0.0
    %1362 = vmatprep.subr.mxu0 0.0
    %1363 = vmatpush1.msra.mxu0 0.0
    %1364 = vmatprep.subr.mxu0 0.0
    %1365 = vmatpush1.msra.mxu0 0.0
    %1366 = vmatprep.subr.mxu0 0.0
    %1367 = vmatpush1.msra.mxu0 0.0
    %1368 = vmatprep.subr.mxu0 0.0
    %1369 = vmatpush1.msra.mxu0 0.0
    %1370 = vmatprep.subr.mxu0 0.0
    %1371 = vmatpush1.msra.mxu0 0.0
    %1372 = vmatprep.subr.mxu0 0.0
    %1373 = vmatpush1.msra.mxu0 0.0
    %1374 = vmatprep.subr.mxu0 0.0
    %1375 = vmatpush1.msra.mxu0 0.0
    %1376 = vmatprep.subr.mxu0 0.0
    %1377 = vmatpush1.msra.mxu0 0.0
    %1378 = vmatprep.subr.mxu0 0.0
    %1379 = vmatpush1.msra.mxu0 0.0
    %1380 = vmatprep.subr.mxu0 0.0
    %1381 = vmatpush1.msra.mxu0 0.0
    %1382 = vmatprep.subr.mxu0 0.0
    %1383 = vmatpush1.msra.mxu0 0.0
    %1384 = vmatprep.subr.mxu0 0.0
    %1385 = vmatpush1.msra.mxu0 0.0
    %1386 = vmatprep.subr.mxu0 0.0
    %1387 = vmatpush1.msra.mxu0 0.0
    %1388 = vmatprep.subr.mxu0 0.0
    %1389 = vmatpush1.msra.mxu0 0.0
    %1390 = vmatprep.subr.mxu0 0.0
    %1391 = vmatpush1.msra.mxu0 0.0
    %1392 = vmatprep.subr.mxu0 0.0
    %1393 = vmatpush1.msra.mxu0 0.0
    %1394 = vmatprep.subr.mxu0 0.0
    %1395 = vmatpush1.msra.mxu0 0.0
    %1396 = vmatprep.subr.mxu0 0.0
    %1397 = vmatpush1.msra.mxu0 0.0
    %1398 = vmatprep.subr.mxu0 0.0
    %1399 = vmatpush1.msra.mxu0 0.0
    %1400 = vmatprep.subr.mxu0 0.0
    %1401 = vmatpush1.msra.mxu0 0.0
    %1402 = vmatprep.subr.mxu0 0.0
    %1403 = vmatpush1.msra.mxu0 0.0
    %1404 = vmatprep.subr.mxu0 0.0
    %1405 = vmatpush1.msra.mxu0 0.0
    %1406 = vmatprep.subr.mxu0 0.0
    %1407 = vmatpush1.msra.mxu0 0.0
    %1408 = vmatprep.mubr.f32.mxu0 0.0
    %1409 = vmatmul.mubr.f32.gmra.mrb[0].mxu0 %v1342
    %v1410 = vpop.f32.mrb[0].mxu0
    %v1411 = vadd.f32 %v1020, %v1410
    %v1412 = vpop.f32.mrb[0].mxu0
    %1413 = vdwg.mxu0
    %v1414 = vxor.u32 %v1411, 2147483648
    %v1415 = vmul.f32 %v1414, 1.442695
    %v1416 = vpow.pop %v1415
    %v1417 = vadd.f32 %v1416, 1.0
    %v1418 = vrcp.pop %v1417
    %v1419 = vmul.f32 1.0, %v1418
    %v1420 = vtanh.pop %v1411
    %v1421 = vmul.f32 %v1419, %v1326
    %1423 = vrot.lane.b32.xlu0 %v1420, 64
    %v1424 = vpop.permute.xlu0 %1423
    %v1426 = vmul.f32 %v1419, %v1424
    %1428 = vrot.lane.b32.xlu0 %v1426, 32
    %v1429 = vpop.permute.xlu0 %1428
    %v1431 = vadd.f32 %v1421, %v1429
    %v1432 = vtanh.pop %v1431
    %1434 = vrot.lane.b32.xlu0 %v1432, 64
    %v1435 = vpop.permute.xlu0 %1434
    %v1437 = vmul.f32 %v1419, %v1435
    %1438 = vrot.lane.b32.xlu0 %v680, 32
    %v1439 = vpop.permute.xlu0 %1438
    %1442 = vrot.lane.b32.xlu0 %v1437, 64
    %v1443 = vpop.permute.xlu0 %1442
    %v1445 = vsel %vm157, %v1439, %v1443
    %v1447 = vsel %vm165, %v1445, 0
    %1449 = vmatprep.subr.mxu0 0.0
    %1450 = vmatpush1.msra.mxu0 %v994
    %1451 = vmatprep.subr.mxu0 0.0
    %1452 = vmatpush1.msra.mxu0 %v995
    %1453 = vmatprep.subr.mxu0 0.0
    %1454 = vmatpush1.msra.mxu0 %v996
    %1455 = vmatprep.subr.mxu0 0.0
    %1456 = vmatpush1.msra.mxu0 %v997
    %1457 = vmatprep.subr.mxu0 0.0
    %1458 = vmatpush1.msra.mxu0 %v998
    %1459 = vmatprep.subr.mxu0 0.0
    %1460 = vmatpush1.msra.mxu0 %v999
    %1461 = vmatprep.subr.mxu0 0.0
    %1462 = vmatpush1.msra.mxu0 %v1000
    %1463 = vmatprep.subr.mxu0 0.0
    %1464 = vmatpush1.msra.mxu0 %v1001
    %1465 = vmatprep.subr.mxu0 0.0
    %1466 = vmatpush1.msra.mxu0 0.0
    %1467 = vmatprep.subr.mxu0 0.0
    %1468 = vmatpush1.msra.mxu0 0.0
    %1469 = vmatprep.subr.mxu0 0.0
    %1470 = vmatpush1.msra.mxu0 0.0
    %1471 = vmatprep.subr.mxu0 0.0
    %1472 = vmatpush1.msra.mxu0 0.0
    %1473 = vmatprep.subr.mxu0 0.0
    %1474 = vmatpush1.msra.mxu0 0.0
    %1475 = vmatprep.subr.mxu0 0.0
    %1476 = vmatpush1.msra.mxu0 0.0
    %1477 = vmatprep.subr.mxu0 0.0
    %1478 = vmatpush1.msra.mxu0 0.0
    %1479 = vmatprep.subr.mxu0 0.0
    %1480 = vmatpush1.msra.mxu0 0.0
    %1481 = vmatprep.subr.mxu0 0.0
    %1482 = vmatpush1.msra.mxu0 0.0
    %1483 = vmatprep.subr.mxu0 0.0
    %1484 = vmatpush1.msra.mxu0 0.0
    %1485 = vmatprep.subr.mxu0 0.0
    %1486 = vmatpush1.msra.mxu0 0.0
    %1487 = vmatprep.subr.mxu0 0.0
    %1488 = vmatpush1.msra.mxu0 0.0
    %1489 = vmatprep.subr.mxu0 0.0
    %1490 = vmatpush1.msra.mxu0 0.0
    %1491 = vmatprep.subr.mxu0 0.0
    %1492 = vmatpush1.msra.mxu0 0.0
    %1493 = vmatprep.subr.mxu0 0.0
    %1494 = vmatpush1.msra.mxu0 0.0
    %1495 = vmatprep.subr.mxu0 0.0
    %1496 = vmatpush1.msra.mxu0 0.0
    %1497 = vmatprep.subr.mxu0 0.0
    %1498 = vmatpush1.msra.mxu0 0.0
    %1499 = vmatprep.subr.mxu0 0.0
    %1500 = vmatpush1.msra.mxu0 0.0
    %1501 = vmatprep.subr.mxu0 0.0
    %1502 = vmatpush1.msra.mxu0 0.0
    %1503 = vmatprep.subr.mxu0 0.0
    %1504 = vmatpush1.msra.mxu0 0.0
    %1505 = vmatprep.subr.mxu0 0.0
    %1506 = vmatpush1.msra.mxu0 0.0
    %1507 = vmatprep.subr.mxu0 0.0
    %1508 = vmatpush1.msra.mxu0 0.0
    %1509 = vmatprep.subr.mxu0 0.0
    %1510 = vmatpush1.msra.mxu0 0.0
    %1511 = vmatprep.subr.mxu0 0.0
    %1512 = vmatpush1.msra.mxu0 0.0
    %1513 = vmatprep.mubr.f32.mxu0 0.0
    %1514 = vmatmul.mubr.f32.gmra.mrb[0].mxu0 %v1447
    %v1515 = vpop.f32.mrb[0].mxu0
    %v1516 = vadd.f32 %v1020, %v1515
    %v1517 = vpop.f32.mrb[0].mxu0
    %1518 = vdwg.mxu0
    %v1519 = vxor.u32 %v1516, 2147483648
    %v1520 = vmul.f32 %v1519, 1.442695
    %v1521 = vpow.pop %v1520
    %v1522 = vadd.f32 %v1521, 1.0
    %v1523 = vrcp.pop %v1522
    %v1524 = vmul.f32 1.0, %v1523
    %v1525 = vtanh.pop %v1516
    %v1526 = vmul.f32 %v1524, %v1431
    %1528 = vrot.lane.b32.xlu0 %v1525, 64
    %v1529 = vpop.permute.xlu0 %1528
    %v1531 = vmul.f32 %v1524, %v1529
    %1533 = vrot.lane.b32.xlu0 %v1531, 32
    %v1534 = vpop.permute.xlu0 %1533
    %v1536 = vadd.f32 %v1526, %v1534
    %v1537 = vtanh.pop %v1536
    %1539 = vrot.lane.b32.xlu0 %v1537, 64
    %v1540 = vpop.permute.xlu0 %1539
    %v1542 = vmul.f32 %v1524, %v1540
    %1543 = vrot.lane.b32.xlu0 %v784, 32
    %v1544 = vpop.permute.xlu0 %1543
    %1547 = vrot.lane.b32.xlu0 %v1542, 64
    %v1548 = vpop.permute.xlu0 %1547
    %v1550 = vsel %vm157, %v1544, %v1548
    %v1552 = vsel %vm165, %v1550, 0
    %1554 = vmatprep.subr.mxu0 0.0
    %1555 = vmatpush1.msra.mxu0 %v994
    %1556 = vmatprep.subr.mxu0 0.0
    %1557 = vmatpush1.msra.mxu0 %v995
    %1558 = vmatprep.subr.mxu0 0.0
    %1559 = vmatpush1.msra.mxu0 %v996
    %1560 = vmatprep.subr.mxu0 0.0
    %1561 = vmatpush1.msra.mxu0 %v997
    %1562 = vmatprep.subr.mxu0 0.0
    %1563 = vmatpush1.msra.mxu0 %v998
    %1564 = vmatprep.subr.mxu0 0.0
    %1565 = vmatpush1.msra.mxu0 %v999
    %1566 = vmatprep.subr.mxu0 0.0
    %1567 = vmatpush1.msra.mxu0 %v1000
    %1568 = vmatprep.subr.mxu0 0.0
    %1569 = vmatpush1.msra.mxu0 %v1001
    %1570 = vmatprep.subr.mxu0 0.0
    %1571 = vmatpush1.msra.mxu0 0.0
    %1572 = vmatprep.subr.mxu0 0.0
    %1573 = vmatpush1.msra.mxu0 0.0
    %1574 = vmatprep.subr.mxu0 0.0
    %1575 = vmatpush1.msra.mxu0 0.0
    %1576 = vmatprep.subr.mxu0 0.0
    %1577 = vmatpush1.msra.mxu0 0.0
    %1578 = vmatprep.subr.mxu0 0.0
    %1579 = vmatpush1.msra.mxu0 0.0
    %1580 = vmatprep.subr.mxu0 0.0
    %1581 = vmatpush1.msra.mxu0 0.0
    %1582 = vmatprep.subr.mxu0 0.0
    %1583 = vmatpush1.msra.mxu0 0.0
    %1584 = vmatprep.subr.mxu0 0.0
    %1585 = vmatpush1.msra.mxu0 0.0
    %1586 = vmatprep.subr.mxu0 0.0
    %1587 = vmatpush1.msra.mxu0 0.0
    %1588 = vmatprep.subr.mxu0 0.0
    %1589 = vmatpush1.msra.mxu0 0.0
    %1590 = vmatprep.subr.mxu0 0.0
    %1591 = vmatpush1.msra.mxu0 0.0
    %1592 = vmatprep.subr.mxu0 0.0
    %1593 = vmatpush1.msra.mxu0 0.0
    %1594 = vmatprep.subr.mxu0 0.0
    %1595 = vmatpush1.msra.mxu0 0.0
    %1596 = vmatprep.subr.mxu0 0.0
    %1597 = vmatpush1.msra.mxu0 0.0
    %1598 = vmatprep.subr.mxu0 0.0
    %1599 = vmatpush1.msra.mxu0 0.0
    %1600 = vmatprep.subr.mxu0 0.0
    %1601 = vmatpush1.msra.mxu0 0.0
    %1602 = vmatprep.subr.mxu0 0.0
    %1603 = vmatpush1.msra.mxu0 0.0
    %1604 = vmatprep.subr.mxu0 0.0
    %1605 = vmatpush1.msra.mxu0 0.0
    %1606 = vmatprep.subr.mxu0 0.0
    %1607 = vmatpush1.msra.mxu0 0.0
    %1608 = vmatprep.subr.mxu0 0.0
    %1609 = vmatpush1.msra.mxu0 0.0
    %1610 = vmatprep.subr.mxu0 0.0
    %1611 = vmatpush1.msra.mxu0 0.0
    %1612 = vmatprep.subr.mxu0 0.0
    %1613 = vmatpush1.msra.mxu0 0.0
    %1614 = vmatprep.subr.mxu0 0.0
    %1615 = vmatpush1.msra.mxu0 0.0
    %1616 = vmatprep.subr.mxu0 0.0
    %1617 = vmatpush1.msra.mxu0 0.0
    %1618 = vmatprep.mubr.f32.mxu0 0.0
    %1619 = vmatmul.mubr.f32.gmra.mrb[0].mxu0 %v1552
    %v1620 = vpop.f32.mrb[0].mxu0
    %v1621 = vadd.f32 %v1020, %v1620
    %v1622 = vpop.f32.mrb[0].mxu0
    %1623 = vdwg.mxu0
    %v1624 = vxor.u32 %v1621, 2147483648
    %v1625 = vmul.f32 %v1624, 1.442695
    %v1626 = vpow.pop %v1625
    %v1627 = vadd.f32 %v1626, 1.0
    %v1628 = vrcp.pop %v1627
    %v1629 = vmul.f32 1.0, %v1628
    %v1630 = vtanh.pop %v1621
    %v1631 = vmul.f32 %v1629, %v1536
    %1633 = vrot.lane.b32.xlu0 %v1630, 64
    %v1634 = vpop.permute.xlu0 %1633
    %v1636 = vmul.f32 %v1629, %v1634
    %1638 = vrot.lane.b32.xlu0 %v1636, 32
    %v1639 = vpop.permute.xlu0 %1638
    %v1641 = vadd.f32 %v1631, %v1639
    %v1642 = vtanh.pop %v1641
    %1644 = vrot.lane.b32.xlu0 %v1642, 64
    %v1645 = vpop.permute.xlu0 %1644
    %v1647 = vmul.f32 %v1629, %v1645
    %1648 = vrot.lane.b32.xlu0 %v888, 32
    %v1649 = vpop.permute.xlu0 %1648
    %1652 = vrot.lane.b32.xlu0 %v1647, 64
    %v1653 = vpop.permute.xlu0 %1652
    %v1655 = vsel %vm157, %v1649, %v1653
    %v1657 = vsel %vm165, %v1655, 0
    %1659 = vmatprep.subr.mxu0 0.0
    %1660 = vmatpush1.msra.mxu0 %v994
    %1661 = vmatprep.subr.mxu0 0.0
    %1662 = vmatpush1.msra.mxu0 %v995
    %1663 = vmatprep.subr.mxu0 0.0
    %1664 = vmatpush1.msra.mxu0 %v996
    %1665 = vmatprep.subr.mxu0 0.0
    %1666 = vmatpush1.msra.mxu0 %v997
    %1667 = vmatprep.subr.mxu0 0.0
    %1668 = vmatpush1.msra.mxu0 %v998
    %1669 = vmatprep.subr.mxu0 0.0
    %1670 = vmatpush1.msra.mxu0 %v999
    %1671 = vmatprep.subr.mxu0 0.0
    %1672 = vmatpush1.msra.mxu0 %v1000
    %1673 = vmatprep.subr.mxu0 0.0
    %1674 = vmatpush1.msra.mxu0 %v1001
    %1675 = vmatprep.subr.mxu0 0.0
    %1676 = vmatpush1.msra.mxu0 0.0
    %1677 = vmatprep.subr.mxu0 0.0
    %1678 = vmatpush1.msra.mxu0 0.0
    %1679 = vmatprep.subr.mxu0 0.0
    %1680 = vmatpush1.msra.mxu0 0.0
    %1681 = vmatprep.subr.mxu0 0.0
    %1682 = vmatpush1.msra.mxu0 0.0
    %1683 = vmatprep.subr.mxu0 0.0
    %1684 = vmatpush1.msra.mxu0 0.0
    %1685 = vmatprep.subr.mxu0 0.0
    %1686 = vmatpush1.msra.mxu0 0.0
    %1687 = vmatprep.subr.mxu0 0.0
    %1688 = vmatpush1.msra.mxu0 0.0
    %1689 = vmatprep.subr.mxu0 0.0
    %1690 = vmatpush1.msra.mxu0 0.0
    %1691 = vmatprep.subr.mxu0 0.0
    %1692 = vmatpush1.msra.mxu0 0.0
    %1693 = vmatprep.subr.mxu0 0.0
    %1694 = vmatpush1.msra.mxu0 0.0
    %1695 = vmatprep.subr.mxu0 0.0
    %1696 = vmatpush1.msra.mxu0 0.0
    %1697 = vmatprep.subr.mxu0 0.0
    %1698 = vmatpush1.msra.mxu0 0.0
    %1699 = vmatprep.subr.mxu0 0.0
    %1700 = vmatpush1.msra.mxu0 0.0
    %1701 = vmatprep.subr.mxu0 0.0
    %1702 = vmatpush1.msra.mxu0 0.0
    %1703 = vmatprep.subr.mxu0 0.0
    %1704 = vmatpush1.msra.mxu0 0.0
    %1705 = vmatprep.subr.mxu0 0.0
    %1706 = vmatpush1.msra.mxu0 0.0
    %1707 = vmatprep.subr.mxu0 0.0
    %1708 = vmatpush1.msra.mxu0 0.0
    %1709 = vmatprep.subr.mxu0 0.0
    %1710 = vmatpush1.msra.mxu0 0.0
    %1711 = vmatprep.subr.mxu0 0.0
    %1712 = vmatpush1.msra.mxu0 0.0
    %1713 = vmatprep.subr.mxu0 0.0
    %1714 = vmatpush1.msra.mxu0 0.0
    %1715 = vmatprep.subr.mxu0 0.0
    %1716 = vmatpush1.msra.mxu0 0.0
    %1717 = vmatprep.subr.mxu0 0.0
    %1718 = vmatpush1.msra.mxu0 0.0
    %1719 = vmatprep.subr.mxu0 0.0
    %1720 = vmatpush1.msra.mxu0 0.0
    %1721 = vmatprep.subr.mxu0 0.0
    %1722 = vmatpush1.msra.mxu0 0.0
    %1723 = vmatprep.mubr.f32.mxu0 0.0
    %1724 = vmatmul.mubr.f32.gmra.mrb[0].mxu0 %v1657
    %v1725 = vpop.f32.mrb[0].mxu0
    %v1726 = vadd.f32 %v1020, %v1725
    %v1727 = vpop.f32.mrb[0].mxu0
    %1728 = vdwg.mxu0
    %v1729 = vxor.u32 %v1726, 2147483648
    %v1730 = vmul.f32 %v1729, 1.442695
    %v1731 = vpow.pop %v1730
    %v1732 = vadd.f32 %v1731, 1.0
    %v1733 = vrcp.pop %v1732
    %v1734 = vmul.f32 1.0, %v1733
    %v1735 = vtanh.pop %v1726
    %v1736 = vmul.f32 %v1734, %v1641
    %1738 = vrot.lane.b32.xlu0 %v1735, 64
    %v1739 = vpop.permute.xlu0 %1738
    %v1741 = vmul.f32 %v1734, %v1739
    %1743 = vrot.lane.b32.xlu0 %v1741, 32
    %v1744 = vpop.permute.xlu0 %1743
    %v1746 = vadd.f32 %v1736, %v1744
    %v1747 = vtanh.pop %v1746
    %1749 = vrot.lane.b32.xlu0 %v1747, 64
    %v1750 = vpop.permute.xlu0 %1749
    %v1752 = vmul.f32 %v1734, %v1750
    %1754 = vrot.lane.b32.xlu0 %v992, 32
    %v1755 = vpop.permute.xlu0 %1754
    %1758 = vrot.lane.b32.xlu0 %v1752, 64
    %v1759 = vpop.permute.xlu0 %1758
    %v1761 = vsel %vm157, %v1755, %v1759
    %v1763 = vsel %vm165, %v1761, 0
    %1765 = vmatprep.subr.mxu0 0.0
    %1766 = vmatpush1.msra.mxu0 %v994
    %1767 = vmatprep.subr.mxu0 0.0
    %1768 = vmatpush1.msra.mxu0 %v995
    %1769 = vmatprep.subr.mxu0 0.0
    %1770 = vmatpush1.msra.mxu0 %v996
    %1771 = vmatprep.subr.mxu0 0.0
    %1772 = vmatpush1.msra.mxu0 %v997
    %1773 = vmatprep.subr.mxu0 0.0
    %1774 = vmatpush1.msra.mxu0 %v998
    %1775 = vmatprep.subr.mxu0 0.0
    %1776 = vmatpush1.msra.mxu0 %v999
    %1777 = vmatprep.subr.mxu0 0.0
    %1778 = vmatpush1.msra.mxu0 %v1000
    %1779 = vmatprep.subr.mxu0 0.0
    %1780 = vmatpush1.msra.mxu0 %v1001
    %1781 = vmatprep.subr.mxu0 0.0
    %1782 = vmatpush1.msra.mxu0 0.0
    %1783 = vmatprep.subr.mxu0 0.0
    %1784 = vmatpush1.msra.mxu0 0.0
    %1785 = vmatprep.subr.mxu0 0.0
    %1786 = vmatpush1.msra.mxu0 0.0
    %1787 = vmatprep.subr.mxu0 0.0
    %1788 = vmatpush1.msra.mxu0 0.0
    %1789 = vmatprep.subr.mxu0 0.0
    %1790 = vmatpush1.msra.mxu0 0.0
    %1791 = vmatprep.subr.mxu0 0.0
    %1792 = vmatpush1.msra.mxu0 0.0
    %1793 = vmatprep.subr.mxu0 0.0
    %1794 = vmatpush1.msra.mxu0 0.0
    %1795 = vmatprep.subr.mxu0 0.0
    %1796 = vmatpush1.msra.mxu0 0.0
    %1797 = vmatprep.subr.mxu0 0.0
    %1798 = vmatpush1.msra.mxu0 0.0
    %1799 = vmatprep.subr.mxu0 0.0
    %1800 = vmatpush1.msra.mxu0 0.0
    %1801 = vmatprep.subr.mxu0 0.0
    %1802 = vmatpush1.msra.mxu0 0.0
    %1803 = vmatprep.subr.mxu0 0.0
    %1804 = vmatpush1.msra.mxu0 0.0
    %1805 = vmatprep.subr.mxu0 0.0
    %1806 = vmatpush1.msra.mxu0 0.0
    %1807 = vmatprep.subr.mxu0 0.0
    %1808 = vmatpush1.msra.mxu0 0.0
    %1809 = vmatprep.subr.mxu0 0.0
    %1810 = vmatpush1.msra.mxu0 0.0
    %1811 = vmatprep.subr.mxu0 0.0
    %1812 = vmatpush1.msra.mxu0 0.0
    %1813 = vmatprep.subr.mxu0 0.0
    %1814 = vmatpush1.msra.mxu0 0.0
    %1815 = vmatprep.subr.mxu0 0.0
    %1816 = vmatpush1.msra.mxu0 0.0
    %1817 = vmatprep.subr.mxu0 0.0
    %1818 = vmatpush1.msra.mxu0 0.0
    %1819 = vmatprep.subr.mxu0 0.0
    %1820 = vmatpush1.msra.mxu0 0.0
    %1821 = vmatprep.subr.mxu0 0.0
    %1822 = vmatpush1.msra.mxu0 0.0
    %1823 = vmatprep.subr.mxu0 0.0
    %1824 = vmatpush1.msra.mxu0 0.0
    %1825 = vmatprep.subr.mxu0 0.0
    %1826 = vmatpush1.msra.mxu0 0.0
    %1827 = vmatprep.subr.mxu0 0.0
    %1828 = vmatpush1.msra.mxu0 0.0
    %1829 = vmatprep.mubr.f32.mxu0 0.0
    %1830 = vmatmul.mubr.f32.gmra.mrb[0].mxu0 %v1763
    %v1831 = vpop.f32.mrb[0].mxu0
    %v1832 = vadd.f32 %v1020, %v1831
    %v1833 = vpop.f32.mrb[0].mxu0
    %1834 = vdwg.mxu0
    %v1835 = vxor.u32 %v1832, 2147483648
    %v1836 = vmul.f32 %v1835, 1.442695
    %v1837 = vpow.pop %v1836
    %v1838 = vadd.f32 %v1837, 1.0
    %v1839 = vrcp.pop %v1838
    %v1840 = vmul.f32 1.0, %v1839
    %v1841 = vtanh.pop %v1832
    %v1842 = vmul.f32 %v1840, %v1746
    %1844 = vrot.lane.b32.xlu0 %v1841, 64
    %v1845 = vpop.permute.xlu0 %1844
    %v1847 = vmul.f32 %v1840, %v1845
    %1849 = vrot.lane.b32.xlu0 %v1847, 32
    %v1850 = vpop.permute.xlu0 %1849
    %v1852 = vadd.f32 %v1842, %v1850
    %v1853 = vtanh.pop %v1852
    %1855 = vrot.lane.b32.xlu0 %v1853, 64
    %v1856 = vpop.permute.xlu0 %1855
    %v1858 = vmul.f32 %v1840, %v1856
    %v1859 = vld [vmem:[%s7] sm:$0xff]
    %v1860 = vld [vmem:[%s7 + $0x8] sm:$0xff]
    %v1861 = vld [vmem:[%s7 + $0x10] sm:$0xff]
    %v1862 = vld [vmem:[%s7 + $0x18] sm:$0xff]
    %v1863 = vld [vmem:[#allocation2] sm:$0x1]
    %v1865 = vlaneseq
    %v1866 = vshrl.u32 %v1865, 7
    %v1867 = vsub.s32 0, %v1866
    %v1868 = vrot.slane %v1863, %v1867
    %1871 = vrot.lane.b32.xlu0 %v1858, 32
    %v1872 = vpop.permute.xlu0 %1871
    %v1873 = vsel %vm157, %v1872, 0
    %1875 = vmatprep.subr.mxu0 0.0
    %1876 = vmatpush1.msra.mxu0 %v1859
    %1877 = vmatprep.subr.mxu0 0.0
    %1878 = vmatpush1.msra.mxu0 %v1860
    %1879 = vmatprep.subr.mxu0 0.0
    %1880 = vmatpush1.msra.mxu0 %v1861
    %1881 = vmatprep.subr.mxu0 0.0
    %1882 = vmatpush1.msra.mxu0 %v1862
    %1883 = vmatprep.subr.mxu0 0.0
    %1884 = vmatpush1.msra.mxu0 0.0
    %1885 = vmatprep.subr.mxu0 0.0
    %1886 = vmatpush1.msra.mxu0 0.0
    %1887 = vmatprep.subr.mxu0 0.0
    %1888 = vmatpush1.msra.mxu0 0.0
    %1889 = vmatprep.subr.mxu0 0.0
    %1890 = vmatpush1.msra.mxu0 0.0
    %1891 = vmatprep.subr.mxu0 0.0
    %1892 = vmatpush1.msra.mxu0 0.0
    %1893 = vmatprep.subr.mxu0 0.0
    %1894 = vmatpush1.msra.mxu0 0.0
    %1895 = vmatprep.subr.mxu0 0.0
    %1896 = vmatpush1.msra.mxu0 0.0
    %1897 = vmatprep.subr.mxu0 0.0
    %1898 = vmatpush1.msra.mxu0 0.0
    %1899 = vmatprep.subr.mxu0 0.0
    %1900 = vmatpush1.msra.mxu0 0.0
    %1901 = vmatprep.subr.mxu0 0.0
    %1902 = vmatpush1.msra.mxu0 0.0
    %1903 = vmatprep.subr.mxu0 0.0
    %1904 = vmatpush1.msra.mxu0 0.0
    %1905 = vmatprep.subr.mxu0 0.0
    %1906 = vmatpush1.msra.mxu0 0.0
    %1907 = vmatprep.subr.mxu0 0.0
    %1908 = vmatpush1.msra.mxu0 0.0
    %1909 = vmatprep.subr.mxu0 0.0
    %1910 = vmatpush1.msra.mxu0 0.0
    %1911 = vmatprep.subr.mxu0 0.0
    %1912 = vmatpush1.msra.mxu0 0.0
    %1913 = vmatprep.subr.mxu0 0.0
    %1914 = vmatpush1.msra.mxu0 0.0
    %1915 = vmatprep.subr.mxu0 0.0
    %1916 = vmatpush1.msra.mxu0 0.0
    %1917 = vmatprep.subr.mxu0 0.0
    %1918 = vmatpush1.msra.mxu0 0.0
    %1919 = vmatprep.subr.mxu0 0.0
    %1920 = vmatpush1.msra.mxu0 0.0
    %1921 = vmatprep.subr.mxu0 0.0
    %1922 = vmatpush1.msra.mxu0 0.0
    %1923 = vmatprep.subr.mxu0 0.0
    %1924 = vmatpush1.msra.mxu0 0.0
    %1925 = vmatprep.subr.mxu0 0.0
    %1926 = vmatpush1.msra.mxu0 0.0
    %1927 = vmatprep.subr.mxu0 0.0
    %1928 = vmatpush1.msra.mxu0 0.0
    %1929 = vmatprep.subr.mxu0 0.0
    %1930 = vmatpush1.msra.mxu0 0.0
    %1931 = vmatprep.subr.mxu0 0.0
    %1932 = vmatpush1.msra.mxu0 0.0
    %1933 = vmatprep.subr.mxu0 0.0
    %1934 = vmatpush1.msra.mxu0 0.0
    %1935 = vmatprep.subr.mxu0 0.0
    %1936 = vmatpush1.msra.mxu0 0.0
    %1937 = vmatprep.subr.mxu0 0.0
    %1938 = vmatpush1.msra.mxu0 0.0
    %1939 = vmatprep.mubr.f32.mxu0 0.0
    %1940 = vmatmul.mubr.f32.gmra.mrb[0].mxu0 %v1873
    %v1941 = vpop.f32.mrb[0].mxu0
    %v1942 = vadd.f32 %v1868, %v1941
    %v1943 = vpop.f32.mrb[0].mxu0
    %1944 = vdwg.mxu0
    %vm1945 = vcmask 1024
    %1946 = vst.msk [vmem:[%s9] sm:$0x3] %vm1945, %v1942
    // Predicated region
    $region42: #{tpu_custom_call.1} parent=1 // pred_check
      _
    $region43: #{tpu_custom_call.1} parent=1 // pred_check_branch
      %1948 = sbr.rel (0) target = $region45
    $region44: #{tpu_custom_call.1} parent=1 // pred_region
      _
    $region45: #{tpu_custom_call.1} parent=1 // pred_fallthru
      _
    // Predicated region
    $region46: #{tpu_custom_call.1} parent=1 // pred_check
      _
    $region47: #{tpu_custom_call.1} parent=1 // pred_check_branch
      %1950 = sbr.rel (0) target = $region49
    $region48: #{tpu_custom_call.1} parent=1 // pred_region
      _
    $region49: #{tpu_custom_call.1} parent=1 // pred_fallthru
      _
    %1951 = vsyncpa [#allocation4], 1

</llo_original>
